<compile_context>
chip_gen: v7x
topology: tpu7x:2x2x1
jax: 0.10.0
libtpu: 0.0.40
codegen_flags: <defaults>
</compile_context>

<pallas_src>
import functools

import jax
import jax.numpy as jnp
from jax import lax
from jax.experimental import pallas as pl
from jax.experimental.pallas import tpu as pltpu

_NEG = -1e30  # f32-safe "-inf" sentinel for masked attention scores
# Contract the last dims of both operands: (B, D) x (TN, D) -> (B, TN).
_TRANS_B_DIMS = (((1,), (1,)), ((), ()))


def _set2set_kernel(
    x_ref,      # (TN, D)   node-feature tile
    ids_ref,    # (1, TN)   int32 graph id per node (-1 for padding rows)
    wq_ref,     # (4, D, D) per-gate input weights, q half of q_star (right-mul)
    wr_ref,     # (4, D, D) per-gate input weights, r half of q_star (right-mul)
    wh_ref,     # (4, D, D) per-gate hidden->hidden weights (right-mul)
    b_ref,      # (4, 1, D) per-gate combined bias (b_ih + b_hh)
    q_out_ref,  # (B, D)    output: q_T
    r_out_ref,  # (B, D)    output: r_T
    h_sc, c_sc, q_sc, r_sc,   # (B, D) recurrent state (persists across grid)
    m_sc, l_sc,               # (B, 1) online-softmax running max / denominator
    acc_sc,                   # (B, D) online-softmax weighted-sum accumulator
    *, B,
):
    t = pl.program_id(0)
    n = pl.program_id(1)
    last_t = pl.num_programs(0) - 1
    last_n = pl.num_programs(1) - 1

    # ---- start of processing step t: LSTM update + reset softmax state ----
    @pl.when(n == 0)
    def _start_step():
        @pl.when(t == 0)
        def _init():
            h_sc[...] = jnp.zeros_like(h_sc)
            c_sc[...] = jnp.zeros_like(c_sc)
            q_sc[...] = jnp.zeros_like(q_sc)   # q_star_0 == 0
            r_sc[...] = jnp.zeros_like(r_sc)

        q_prev = q_sc[...]
        r_prev = r_sc[...]
        h_prev = h_sc[...]
        c_prev = c_sc[...]

        def gate(g):  # PyTorch gate order: 0=i, 1=f, 2=g, 3=o
            return (
                jnp.dot(q_prev, wq_ref[g], preferred_element_type=jnp.float32)
                + jnp.dot(r_prev, wr_ref[g], preferred_element_type=jnp.float32)
                + jnp.dot(h_prev, wh_ref[g], preferred_element_type=jnp.float32)
                + b_ref[g]
            )

        i_g = jax.nn.sigmoid(gate(0))
        f_g = jax.nn.sigmoid(gate(1))
        g_g = jnp.tanh(gate(2))
        o_g = jax.nn.sigmoid(gate(3))
        c_new = f_g * c_prev + i_g * g_g
        h_new = o_g * jnp.tanh(c_new)

        c_sc[...] = c_new
        h_sc[...] = h_new
        q_sc[...] = h_new                      # q_t

        m_sc[...] = jnp.full_like(m_sc, _NEG)
        l_sc[...] = jnp.zeros_like(l_sc)
        acc_sc[...] = jnp.zeros_like(acc_sc)

    # ---- attention over this node tile (online softmax, (B, TN) layout) ----
    q = q_sc[...]                                          # (B, D)
    x_tile = x_ref[...]                                    # (TN, D)
    ids = ids_ref[...]                                     # (1, TN)
    tn = ids.shape[-1]

    graph_iota = lax.broadcasted_iota(jnp.int32, (B, tn), 0)
    mask = ids == graph_iota                               # (B, TN)

    # Trans-B contraction over D -> no separately streamed x^T needed.
    s = lax.dot_general(q, x_tile, _TRANS_B_DIMS,
                        preferred_element_type=jnp.float32)       # (B, TN)
    s = jnp.where(mask, s, _NEG)

    m_prev = m_sc[...]
    m_new = jnp.maximum(m_prev, jnp.max(s, axis=-1, keepdims=True))   # (B, 1)
    alpha = jnp.exp(m_prev - m_new)                                   # (B, 1)
    # exact zeros off-graph / padding rows (robust to tiles with no nodes of a
    # given graph, where m_new may still be the _NEG sentinel).
    p = jnp.where(mask, jnp.exp(s - m_new), 0.0)                      # (B, TN)

    l_sc[...] = alpha * l_sc[...] + jnp.sum(p, axis=-1, keepdims=True)
    acc_sc[...] = alpha * acc_sc[...] + jnp.dot(
        p, x_tile, preferred_element_type=jnp.float32)                # (B, D)
    m_sc[...] = m_new

    # ---- finalize step t; write outputs only at the very end ----
    @pl.when(n == last_n)
    def _finish_step():
        # empty graph -> l == 0 -> r == 0, matching the reference semantics.
        r_t = acc_sc[...] * pl.reciprocal(l_sc[...] + 1e-16, approx=True)
        r_sc[...] = r_t

        @pl.when(t == last_t)
        def _write_out():
            q_out_ref[...] = q_sc[...].astype(q_out_ref.dtype)
            r_out_ref[...] = r_t.astype(r_out_ref.dtype)


def set2set_pallas(x, batch, params, processing_steps, num_graphs, *, node_tile=1024):
    """Set2Set forward.  x: (N, D), batch: (N,) int32, params: PyTorch
    LSTM(2D -> D, num_layers=1) parameters.  Returns q_star: (num_graphs, 2D)."""
    assert node_tile % 128 == 0, "node_tile must be a multiple of 128 (lane width)"
    N, D = x.shape
    B = int(num_graphs)
    T = int(processing_steps)

    # --- pick tile: as large as requested but no bigger than padded-N ---
    n_pad_min = ((N + 127) // 128) * 128
    tile = min(node_tile, n_pad_min)

    # --- pad node axis to whole tiles; padded nodes get id -1 (masked out) ---
    n_tiles = pl.cdiv(N, tile)
    n_pad = n_tiles * tile
    x_p = jnp.zeros((n_pad, D), x.dtype).at[:N, :].set(x)
    ids = jnp.full((1, n_pad), -1, jnp.int32).at[0, :N].set(batch.astype(jnp.int32))

    # --- per-gate, pre-transposed LSTM weights (PyTorch gate order i,f,g,o) ---
    w_ih = params["w_ih"].astype(jnp.float32)    # (4D, 2D)
    w_hh = params["w_hh"].astype(jnp.float32)    # (4D, D)
    bias = (params["b_ih"] + params["b_hh"]).astype(jnp.float32)   # (4D,)
    w_ih_g = w_ih.reshape(4, D, 2 * D)
    wq = jnp.transpose(w_ih_g[:, :, :D], (0, 2, 1))        # (4, D, D): q @ wq[g]
    wr = jnp.transpose(w_ih_g[:, :, D:], (0, 2, 1))        # (4, D, D): r @ wr[g]
    wh = jnp.transpose(w_hh.reshape(4, D, D), (0, 2, 1))   # (4, D, D): h @ wh[g]
    bg = bias.reshape(4, 1, D)

    kernel = functools.partial(_set2set_kernel, B=B)
    const3 = lambda t, n: (0, 0, 0)

    # Rough VMEM budget: double-buffered streamed tiles + resident weights,
    # outputs and scratch, with 2x headroom; clamp to [16 MiB, 64 MiB] so the
    # per-generation scoped defaults never bite and v7x physical VMEM is safe.
    itemsize = 4
    streamed = 2 * (tile * D + tile) * itemsize
    resident = (3 * 4 * D * D + 4 * D + 2 * B * D + 5 * B * D + 2 * B) * itemsize
    vmem_limit = int(min(64 * 1024 * 1024,
                         max(16 * 1024 * 1024, 2 * (streamed + resident))))

    q_out, r_out = pl.pallas_call(
        kernel,
        out_shape=(
            jax.ShapeDtypeStruct((B, D), x.dtype),
            jax.ShapeDtypeStruct((B, D), x.dtype),
        ),
        grid_spec=pltpu.PrefetchScalarGridSpec(
            num_scalar_prefetch=0,
            grid=(T, n_tiles),
            in_specs=[
                pl.BlockSpec((tile, D), lambda t, n: (n, 0)),        # x tile
                pl.BlockSpec((1, tile), lambda t, n: (0, n)),        # batch ids
                pl.BlockSpec((4, D, D), const3),                     # wq
                pl.BlockSpec((4, D, D), const3),                     # wr
                pl.BlockSpec((4, D, D), const3),                     # wh
                pl.BlockSpec((4, 1, D), const3),                     # bias
            ],
            out_specs=[
                pl.BlockSpec((B, D), lambda t, n: (0, 0)),           # q_T
                pl.BlockSpec((B, D), lambda t, n: (0, 0)),           # r_T
            ],
            scratch_shapes=[
                pltpu.VMEM((B, D), jnp.float32),   # h
                pltpu.VMEM((B, D), jnp.float32),   # c
                pltpu.VMEM((B, D), jnp.float32),   # q_t
                pltpu.VMEM((B, D), jnp.float32),   # r_{t-1} / r_t
                pltpu.VMEM((B, 1), jnp.float32),   # running max
                pltpu.VMEM((B, 1), jnp.float32),   # running denominator
                pltpu.VMEM((B, D), jnp.float32),   # running weighted sum
            ],
        ),
        compiler_params=pltpu.CompilerParams(
            # T is a true recurrence; the node axis is an online-softmax
            # reduction carried in scratch -> both must stay sequential.
            dimension_semantics=("arbitrary", "arbitrary"),
            vmem_limit_bytes=vmem_limit,
        ),
    )(x_p, ids, wq, wr, wh, bg)

    return jnp.concatenate([q_out, r_out], axis=-1)


def set2set_reference(x, batch, params, processing_steps, num_graphs):
    """Pure-JAX reference mirroring the PyTorch forward (segment ops)."""
    N, D = x.shape
    w_ih, w_hh = params["w_ih"], params["w_hh"]
    bias = params["b_ih"] + params["b_hh"]
    h = jnp.zeros((num_graphs, D), jnp.float32)
    c = jnp.zeros((num_graphs, D), jnp.float32)
    q_star = jnp.zeros((num_graphs, 2 * D), jnp.float32)
    for _ in range(processing_steps):
        gates = q_star @ w_ih.T + h @ w_hh.T + bias
        i_g = jax.nn.sigmoid(gates[:, 0 * D:1 * D])
        f_g = jax.nn.sigmoid(gates[:, 1 * D:2 * D])
        g_g = jnp.tanh(gates[:, 2 * D:3 * D])
        o_g = jax.nn.sigmoid(gates[:, 3 * D:4 * D])
        c = f_g * c + i_g * g_g
        h = o_g * jnp.tanh(c)
        q = h
        e = jnp.sum(x * q[batch], axis=-1, keepdims=True)
        e_max = jax.ops.segment_max(e, batch, num_segments=num_graphs)
        exp_e = jnp.exp(e - e_max[batch])
        denom = jax.ops.segment_sum(exp_e, batch, num_segments=num_graphs)
        a = exp_e / (denom[batch] + 1e-16)
        r = jax.ops.segment_sum(a * x, batch, num_segments=num_graphs)
        q_star = jnp.concatenate([q, r], axis=-1)
    return q_star


if __name__ == "__main__":
    # Small but multi-tile problem: N=200 nodes, D=32 channels, B=3 uneven
    # graphs, T=3 processing steps.  node_tile=128 forces 2 node tiles so the
    # online-softmax / carried-reduction path is exercised.
    N, D, B, T = 200, 32, 3, 3
    key = jax.random.PRNGKey(0)
    k_x, k1, k2, k3, k4 = jax.random.split(key, 5)

    x = jax.random.normal(k_x, (N, D), dtype=jnp.float32)
    batch = jnp.concatenate([
        jnp.full((97,), 0, jnp.int32),
        jnp.full((58,), 1, jnp.int32),
        jnp.full((45,), 2, jnp.int32),
    ])

    # LSTM(in=2D, hidden=D, num_layers=1) params, PyTorch-style U(-k, k) init.
    bound = 1.0 / jnp.sqrt(jnp.float32(D))
    params = {
        "w_ih": jax.random.uniform(k1, (4 * D, 2 * D), jnp.float32, -bound, bound),
        "w_hh": jax.random.uniform(k2, (4 * D, D), jnp.float32, -bound, bound),
        "b_ih": jax.random.uniform(k3, (4 * D,), jnp.float32, -bound, bound),
        "b_hh": jax.random.uniform(k4, (4 * D,), jnp.float32, -bound, bound),
    }

    ref = set2set_reference(x, batch, params, T, B)

    # Multi-tile path (node axis streamed across 2 tiles).
    out = set2set_pallas(x, batch, params, T, B, node_tile=128)
    out = jax.block_until_ready(out)
    assert out.shape == (B, 2 * D)
    # approx reciprocal on the softmax denominator + online-softmax accumulation
    # order differences -> 1e-3 tolerance.
    assert jnp.allclose(out, ref, atol=1e-3, rtol=1e-3), (out, ref)

    # Single-tile path (default adaptive tile clamps to 256 padded nodes).
    out2 = set2set_pallas(x, batch, params, T, B)
    out2 = jax.block_until_ready(out2)
    assert jnp.allclose(out2, ref, atol=1e-3, rtol=1e-3), (out2, ref)

    print("KERNEL_OK")
</pallas_src>

<mosaic_0001>
module attributes {stable_mosaic.version = 11 : i64} {
  func.func @_set2set_kernel(%arg0: i32, %arg1: i32, %arg2: memref<128x32xf32, #tpu.memory_space<vmem>>, %arg3: memref<1x128xi32, #tpu.memory_space<vmem>>, %arg4: memref<4x32x32xf32, #tpu.memory_space<vmem>>, %arg5: memref<4x32x32xf32, #tpu.memory_space<vmem>>, %arg6: memref<4x32x32xf32, #tpu.memory_space<vmem>>, %arg7: memref<4x1x32xf32, #tpu.memory_space<vmem>>, %arg8: memref<3x32xf32, #tpu.memory_space<vmem>>, %arg9: memref<3x32xf32, #tpu.memory_space<vmem>>, %arg10: memref<3x32xf32, #tpu.memory_space<vmem>>, %arg11: memref<3x32xf32, #tpu.memory_space<vmem>>, %arg12: memref<3x32xf32, #tpu.memory_space<vmem>>, %arg13: memref<3x32xf32, #tpu.memory_space<vmem>>, %arg14: memref<3x1xf32, #tpu.memory_space<vmem>>, %arg15: memref<3x1xf32, #tpu.memory_space<vmem>>, %arg16: memref<3x32xf32, #tpu.memory_space<vmem>>) attributes {dimension_semantics = [#tpu.dimension_semantics<arbitrary>, #tpu.dimension_semantics<arbitrary>], iteration_bounds = array<i64: 3, 2>, scalar_prefetch = 0 : i64, scratch_operands = 7 : i64, tpu.core_type = #tpu.core_type<tc>, window_params = [{transform_indices = @transform_0, window_bounds = array<i64: 128, 32>}, {transform_indices = @transform_1, window_bounds = array<i64: 1, 128>}, {pipeline_mode = #tpu.pipeline_mode<synchronous>, transform_indices = @transform_2, window_bounds = array<i64: 4, 32, 32>}, {pipeline_mode = #tpu.pipeline_mode<synchronous>, transform_indices = @transform_3, window_bounds = array<i64: 4, 32, 32>}, {pipeline_mode = #tpu.pipeline_mode<synchronous>, transform_indices = @transform_4, window_bounds = array<i64: 4, 32, 32>}, {pipeline_mode = #tpu.pipeline_mode<synchronous>, transform_indices = @transform_5, window_bounds = array<i64: 4, 1, 32>}, {pipeline_mode = #tpu.pipeline_mode<synchronous>, transform_indices = @transform_6, window_bounds = array<i64: 3, 32>}, {pipeline_mode = #tpu.pipeline_mode<synchronous>, transform_indices = @transform_7, window_bounds = array<i64: 3, 32>}]} {
    %c0_i32 = arith.constant 0 : i32
    %0 = arith.cmpi eq, %arg1, %c0_i32 : i32
    %1 = arith.extui %0 : i1 to i32
    %c0_i32_0 = arith.constant 0 : i32
    %2 = arith.cmpi ne, %1, %c0_i32_0 : i32
    scf.if %2 {
      %c0_i32_24 = arith.constant 0 : i32
      %39 = arith.cmpi eq, %arg0, %c0_i32_24 : i32
      %40 = arith.extui %39 : i1 to i32
      %c0_i32_25 = arith.constant 0 : i32
      %41 = arith.cmpi ne, %40, %c0_i32_25 : i32
      scf.if %41 {
        %cst_109 = arith.constant 0.000000e+00 : f32
        %136 = vector.broadcast %cst_109 : f32 to vector<3x32xf32>
        %c0_110 = arith.constant 0 : index
        %c0_111 = arith.constant 0 : index
        %137 = vector.load %arg10[%c0_110, %c0_111] : memref<3x32xf32, #tpu.memory_space<vmem>>, vector<3x32xf32>
        tpu.vector_store %arg10[%c0_110, %c0_111], %136 {strides = array<i32>} : memref<3x32xf32, #tpu.memory_space<vmem>>, vector<3x32xf32>,
        %cst_112 = arith.constant 0.000000e+00 : f32
        %138 = vector.broadcast %cst_112 : f32 to vector<3x32xf32>
        %c0_113 = arith.constant 0 : index
        %c0_114 = arith.constant 0 : index
        %139 = vector.load %arg11[%c0_113, %c0_114] : memref<3x32xf32, #tpu.memory_space<vmem>>, vector<3x32xf32>
        tpu.vector_store %arg11[%c0_113, %c0_114], %138 {strides = array<i32>} : memref<3x32xf32, #tpu.memory_space<vmem>>, vector<3x32xf32>,
        %cst_115 = arith.constant 0.000000e+00 : f32
        %140 = vector.broadcast %cst_115 : f32 to vector<3x32xf32>
        %c0_116 = arith.constant 0 : index
        %c0_117 = arith.constant 0 : index
        %141 = vector.load %arg12[%c0_116, %c0_117] : memref<3x32xf32, #tpu.memory_space<vmem>>, vector<3x32xf32>
        tpu.vector_store %arg12[%c0_116, %c0_117], %140 {strides = array<i32>} : memref<3x32xf32, #tpu.memory_space<vmem>>, vector<3x32xf32>,
        %cst_118 = arith.constant 0.000000e+00 : f32
        %142 = vector.broadcast %cst_118 : f32 to vector<3x32xf32>
        %c0_119 = arith.constant 0 : index
        %c0_120 = arith.constant 0 : index
        %143 = vector.load %arg13[%c0_119, %c0_120] : memref<3x32xf32, #tpu.memory_space<vmem>>, vector<3x32xf32>
        tpu.vector_store %arg13[%c0_119, %c0_120], %142 {strides = array<i32>} : memref<3x32xf32, #tpu.memory_space<vmem>>, vector<3x32xf32>,
      } else {
      }
      %c0_26 = arith.constant 0 : index
      %c0_27 = arith.constant 0 : index
      %42 = vector.load %arg12[%c0_26, %c0_27] : memref<3x32xf32, #tpu.memory_space<vmem>>, vector<3x32xf32>
      %c0_28 = arith.constant 0 : index
      %c0_29 = arith.constant 0 : index
      %43 = vector.load %arg13[%c0_28, %c0_29] : memref<3x32xf32, #tpu.memory_space<vmem>>, vector<3x32xf32>
      %c0_30 = arith.constant 0 : index
      %c0_31 = arith.constant 0 : index
      %44 = vector.load %arg10[%c0_30, %c0_31] : memref<3x32xf32, #tpu.memory_space<vmem>>, vector<3x32xf32>
      %c0_32 = arith.constant 0 : index
      %c0_33 = arith.constant 0 : index
      %45 = vector.load %arg11[%c0_32, %c0_33] : memref<3x32xf32, #tpu.memory_space<vmem>>, vector<3x32xf32>
      %c0_34 = arith.constant 0 : index
      %c0_35 = arith.constant 0 : index
      %c0_36 = arith.constant 0 : index
      %46 = vector.load %arg4[%c0_34, %c0_35, %c0_36] : memref<4x32x32xf32, #tpu.memory_space<vmem>>, vector<1x32x32xf32>
      %47 = vector.shape_cast %46 : vector<1x32x32xf32> to vector<32x32xf32>
      %cst_37 = arith.constant dense<0.000000e+00> : vector<3x32xf32>
      %48 = tpu.matmul %42, %47, %cst_37 {dimension_numbers = #tpu.dot_dimension_numbers<[1], [0], [0], [1], [0, 0, 1, 1], [], []>} : vector<3x32xf32>, vector<32x32xf32>, vector<3x32xf32> -> vector<3x32xf32>
      %c0_38 = arith.constant 0 : index
      %c0_39 = arith.constant 0 : index
      %c0_40 = arith.constant 0 : index
      %49 = vector.load %arg5[%c0_38, %c0_39, %c0_40] : memref<4x32x32xf32, #tpu.memory_space<vmem>>, vector<1x32x32xf32>
      %50 = vector.shape_cast %49 : vector<1x32x32xf32> to vector<32x32xf32>
      %cst_41 = arith.constant dense<0.000000e+00> : vector<3x32xf32>
      %51 = tpu.matmul %43, %50, %cst_41 {dimension_numbers = #tpu.dot_dimension_numbers<[1], [0], [0], [1], [0, 0, 1, 1], [], []>} : vector<3x32xf32>, vector<32x32xf32>, vector<3x32xf32> -> vector<3x32xf32>
      %52 = arith.addf %48, %51 : vector<3x32xf32>
      %c0_42 = arith.constant 0 : index
      %c0_43 = arith.constant 0 : index
      %c0_44 = arith.constant 0 : index
      %53 = vector.load %arg6[%c0_42, %c0_43, %c0_44] : memref<4x32x32xf32, #tpu.memory_space<vmem>>, vector<1x32x32xf32>
      %54 = vector.shape_cast %53 : vector<1x32x32xf32> to vector<32x32xf32>
      %cst_45 = arith.constant dense<0.000000e+00> : vector<3x32xf32>
      %55 = tpu.matmul %44, %54, %cst_45 {dimension_numbers = #tpu.dot_dimension_numbers<[1], [0], [0], [1], [0, 0, 1, 1], [], []>} : vector<3x32xf32>, vector<32x32xf32>, vector<3x32xf32> -> vector<3x32xf32>
      %56 = arith.addf %52, %55 : vector<3x32xf32>
      %c0_46 = arith.constant 0 : index
      %c0_47 = arith.constant 0 : index
      %c0_48 = arith.constant 0 : index
      %57 = vector.load %arg7[%c0_46, %c0_47, %c0_48] : memref<4x1x32xf32, #tpu.memory_space<vmem>>, vector<1x1x32xf32>
      %58 = vector.shape_cast %57 : vector<1x1x32xf32> to vector<1x32xf32>
      %59 = vector.broadcast %58 : vector<1x32xf32> to vector<3x32xf32>
      %60 = arith.addf %56, %59 : vector<3x32xf32>
      %61 = arith.negf %60 : vector<3x32xf32>
      %62 = math.exp %61 : vector<3x32xf32>
      %cst_49 = arith.constant 1.000000e+00 : f32
      %63 = vector.broadcast %cst_49 : f32 to vector<3x32xf32>
      %64 = arith.addf %63, %62 : vector<3x32xf32>
      %65 = arith.divf %63, %64 : vector<3x32xf32>
      %c1 = arith.constant 1 : index
      %c0_50 = arith.constant 0 : index
      %c0_51 = arith.constant 0 : index
      %66 = vector.load %arg4[%c1, %c0_50, %c0_51] : memref<4x32x32xf32, #tpu.memory_space<vmem>>, vector<1x32x32xf32>
      %67 = vector.shape_cast %66 : vector<1x32x32xf32> to vector<32x32xf32>
      %cst_52 = arith.constant dense<0.000000e+00> : vector<3x32xf32>
      %68 = tpu.matmul %42, %67, %cst_52 {dimension_numbers = #tpu.dot_dimension_numbers<[1], [0], [0], [1], [0, 0, 1, 1], [], []>} : vector<3x32xf32>, vector<32x32xf32>, vector<3x32xf32> -> vector<3x32xf32>
      %c1_53 = arith.constant 1 : index
      %c0_54 = arith.constant 0 : index
      %c0_55 = arith.constant 0 : index
      %69 = vector.load %arg5[%c1_53, %c0_54, %c0_55] : memref<4x32x32xf32, #tpu.memory_space<vmem>>, vector<1x32x32xf32>
      %70 = vector.shape_cast %69 : vector<1x32x32xf32> to vector<32x32xf32>
      %cst_56 = arith.constant dense<0.000000e+00> : vector<3x32xf32>
      %71 = tpu.matmul %43, %70, %cst_56 {dimension_numbers = #tpu.dot_dimension_numbers<[1], [0], [0], [1], [0, 0, 1, 1], [], []>} : vector<3x32xf32>, vector<32x32xf32>, vector<3x32xf32> -> vector<3x32xf32>
      %72 = arith.addf %68, %71 : vector<3x32xf32>
      %c1_57 = arith.constant 1 : index
      %c0_58 = arith.constant 0 : index
      %c0_59 = arith.constant 0 : index
      %73 = vector.load %arg6[%c1_57, %c0_58, %c0_59] : memref<4x32x32xf32, #tpu.memory_space<vmem>>, vector<1x32x32xf32>
      %74 = vector.shape_cast %73 : vector<1x32x32xf32> to vector<32x32xf32>
      %cst_60 = arith.constant dense<0.000000e+00> : vector<3x32xf32>
      %75 = tpu.matmul %44, %74, %cst_60 {dimension_numbers = #tpu.dot_dimension_numbers<[1], [0], [0], [1], [0, 0, 1, 1], [], []>} : vector<3x32xf32>, vector<32x32xf32>, vector<3x32xf32> -> vector<3x32xf32>
      %76 = arith.addf %72, %75 : vector<3x32xf32>
      %c1_61 = arith.constant 1 : index
      %c0_62 = arith.constant 0 : index
      %c0_63 = arith.constant 0 : index
      %77 = vector.load %arg7[%c1_61, %c0_62, %c0_63] : memref<4x1x32xf32, #tpu.memory_space<vmem>>, vector<1x1x32xf32>
      %78 = vector.shape_cast %77 : vector<1x1x32xf32> to vector<1x32xf32>
      %79 = vector.broadcast %78 : vector<1x32xf32> to vector<3x32xf32>
      %80 = arith.addf %76, %79 : vector<3x32xf32>
      %81 = arith.negf %80 : vector<3x32xf32>
      %82 = math.exp %81 : vector<3x32xf32>
      %cst_64 = arith.constant 1.000000e+00 : f32
      %83 = vector.broadcast %cst_64 : f32 to vector<3x32xf32>
      %84 = arith.addf %83, %82 : vector<3x32xf32>
      %85 = arith.divf %83, %84 : vector<3x32xf32>
      %c2 = arith.constant 2 : index
      %c0_65 = arith.constant 0 : index
      %c0_66 = arith.constant 0 : index
      %86 = vector.load %arg4[%c2, %c0_65, %c0_66] : memref<4x32x32xf32, #tpu.memory_space<vmem>>, vector<1x32x32xf32>
      %87 = vector.shape_cast %86 : vector<1x32x32xf32> to vector<32x32xf32>
      %cst_67 = arith.constant dense<0.000000e+00> : vector<3x32xf32>
      %88 = tpu.matmul %42, %87, %cst_67 {dimension_numbers = #tpu.dot_dimension_numbers<[1], [0], [0], [1], [0, 0, 1, 1], [], []>} : vector<3x32xf32>, vector<32x32xf32>, vector<3x32xf32> -> vector<3x32xf32>
      %c2_68 = arith.constant 2 : index
      %c0_69 = arith.constant 0 : index
      %c0_70 = arith.constant 0 : index
      %89 = vector.load %arg5[%c2_68, %c0_69, %c0_70] : memref<4x32x32xf32, #tpu.memory_space<vmem>>, vector<1x32x32xf32>
      %90 = vector.shape_cast %89 : vector<1x32x32xf32> to vector<32x32xf32>
      %cst_71 = arith.constant dense<0.000000e+00> : vector<3x32xf32>
      %91 = tpu.matmul %43, %90, %cst_71 {dimension_numbers = #tpu.dot_dimension_numbers<[1], [0], [0], [1], [0, 0, 1, 1], [], []>} : vector<3x32xf32>, vector<32x32xf32>, vector<3x32xf32> -> vector<3x32xf32>
      %92 = arith.addf %88, %91 : vector<3x32xf32>
      %c2_72 = arith.constant 2 : index
      %c0_73 = arith.constant 0 : index
      %c0_74 = arith.constant 0 : index
      %93 = vector.load %arg6[%c2_72, %c0_73, %c0_74] : memref<4x32x32xf32, #tpu.memory_space<vmem>>, vector<1x32x32xf32>
      %94 = vector.shape_cast %93 : vector<1x32x32xf32> to vector<32x32xf32>
      %cst_75 = arith.constant dense<0.000000e+00> : vector<3x32xf32>
      %95 = tpu.matmul %44, %94, %cst_75 {dimension_numbers = #tpu.dot_dimension_numbers<[1], [0], [0], [1], [0, 0, 1, 1], [], []>} : vector<3x32xf32>, vector<32x32xf32>, vector<3x32xf32> -> vector<3x32xf32>
      %96 = arith.addf %92, %95 : vector<3x32xf32>
      %c2_76 = arith.constant 2 : index
      %c0_77 = arith.constant 0 : index
      %c0_78 = arith.constant 0 : index
      %97 = vector.load %arg7[%c2_76, %c0_77, %c0_78] : memref<4x1x32xf32, #tpu.memory_space<vmem>>, vector<1x1x32xf32>
      %98 = vector.shape_cast %97 : vector<1x1x32xf32> to vector<1x32xf32>
      %99 = vector.broadcast %98 : vector<1x32xf32> to vector<3x32xf32>
      %100 = arith.addf %96, %99 : vector<3x32xf32>
      %101 = math.tanh %100 : vector<3x32xf32>
      %c3 = arith.constant 3 : index
      %c0_79 = arith.constant 0 : index
      %c0_80 = arith.constant 0 : index
      %102 = vector.load %arg4[%c3, %c0_79, %c0_80] : memref<4x32x32xf32, #tpu.memory_space<vmem>>, vector<1x32x32xf32>
      %103 = vector.shape_cast %102 : vector<1x32x32xf32> to vector<32x32xf32>
      %cst_81 = arith.constant dense<0.000000e+00> : vector<3x32xf32>
      %104 = tpu.matmul %42, %103, %cst_81 {dimension_numbers = #tpu.dot_dimension_numbers<[1], [0], [0], [1], [0, 0, 1, 1], [], []>} : vector<3x32xf32>, vector<32x32xf32>, vector<3x32xf32> -> vector<3x32xf32>
      %c3_82 = arith.constant 3 : index
      %c0_83 = arith.constant 0 : index
      %c0_84 = arith.constant 0 : index
      %105 = vector.load %arg5[%c3_82, %c0_83, %c0_84] : memref<4x32x32xf32, #tpu.memory_space<vmem>>, vector<1x32x32xf32>
      %106 = vector.shape_cast %105 : vector<1x32x32xf32> to vector<32x32xf32>
      %cst_85 = arith.constant dense<0.000000e+00> : vector<3x32xf32>
      %107 = tpu.matmul %43, %106, %cst_85 {dimension_numbers = #tpu.dot_dimension_numbers<[1], [0], [0], [1], [0, 0, 1, 1], [], []>} : vector<3x32xf32>, vector<32x32xf32>, vector<3x32xf32> -> vector<3x32xf32>
      %108 = arith.addf %104, %107 : vector<3x32xf32>
      %c3_86 = arith.constant 3 : index
      %c0_87 = arith.constant 0 : index
      %c0_88 = arith.constant 0 : index
      %109 = vector.load %arg6[%c3_86, %c0_87, %c0_88] : memref<4x32x32xf32, #tpu.memory_space<vmem>>, vector<1x32x32xf32>
      %110 = vector.shape_cast %109 : vector<1x32x32xf32> to vector<32x32xf32>
      %cst_89 = arith.constant dense<0.000000e+00> : vector<3x32xf32>
      %111 = tpu.matmul %44, %110, %cst_89 {dimension_numbers = #tpu.dot_dimension_numbers<[1], [0], [0], [1], [0, 0, 1, 1], [], []>} : vector<3x32xf32>, vector<32x32xf32>, vector<3x32xf32> -> vector<3x32xf32>
      %112 = arith.addf %108, %111 : vector<3x32xf32>
      %c3_90 = arith.constant 3 : index
      %c0_91 = arith.constant 0 : index
      %c0_92 = arith.constant 0 : index
      %113 = vector.load %arg7[%c3_90, %c0_91, %c0_92] : memref<4x1x32xf32, #tpu.memory_space<vmem>>, vector<1x1x32xf32>
      %114 = vector.shape_cast %113 : vector<1x1x32xf32> to vector<1x32xf32>
      %115 = vector.broadcast %114 : vector<1x32xf32> to vector<3x32xf32>
      %116 = arith.addf %112, %115 : vector<3x32xf32>
      %117 = arith.negf %116 : vector<3x32xf32>
      %118 = math.exp %117 : vector<3x32xf32>
      %cst_93 = arith.constant 1.000000e+00 : f32
      %119 = vector.broadcast %cst_93 : f32 to vector<3x32xf32>
      %120 = arith.addf %119, %118 : vector<3x32xf32>
      %121 = arith.divf %119, %120 : vector<3x32xf32>
      %122 = arith.mulf %85, %45 : vector<3x32xf32>
      %123 = arith.mulf %65, %101 : vector<3x32xf32>
      %124 = arith.addf %122, %123 : vector<3x32xf32>
      %125 = math.tanh %124 : vector<3x32xf32>
      %126 = arith.mulf %121, %125 : vector<3x32xf32>
      %c0_94 = arith.constant 0 : index
      %c0_95 = arith.constant 0 : index
      %127 = vector.load %arg11[%c0_94, %c0_95] : memref<3x32xf32, #tpu.memory_space<vmem>>, vector<3x32xf32>
      tpu.vector_store %arg11[%c0_94, %c0_95], %124 {strides = array<i32>} : memref<3x32xf32, #tpu.memory_space<vmem>>, vector<3x32xf32>,
      %c0_96 = arith.constant 0 : index
      %c0_97 = arith.constant 0 : index
      %128 = vector.load %arg10[%c0_96, %c0_97] : memref<3x32xf32, #tpu.memory_space<vmem>>, vector<3x32xf32>
      tpu.vector_store %arg10[%c0_96, %c0_97], %126 {strides = array<i32>} : memref<3x32xf32, #tpu.memory_space<vmem>>, vector<3x32xf32>,
      %c0_98 = arith.constant 0 : index
      %c0_99 = arith.constant 0 : index
      %129 = vector.load %arg12[%c0_98, %c0_99] : memref<3x32xf32, #tpu.memory_space<vmem>>, vector<3x32xf32>
      tpu.vector_store %arg12[%c0_98, %c0_99], %126 {strides = array<i32>} : memref<3x32xf32, #tpu.memory_space<vmem>>, vector<3x32xf32>,
      %cst_100 = arith.constant -1.000000e+30 : f32
      %130 = vector.broadcast %cst_100 : f32 to vector<3x1xf32>
      %c0_101 = arith.constant 0 : index
      %c0_102 = arith.constant 0 : index
      %131 = vector.load %arg14[%c0_101, %c0_102] : memref<3x1xf32, #tpu.memory_space<vmem>>, vector<3x1xf32>
      tpu.vector_store %arg14[%c0_101, %c0_102], %130 {strides = array<i32>} : memref<3x1xf32, #tpu.memory_space<vmem>>, vector<3x1xf32>,
      %cst_103 = arith.constant 0.000000e+00 : f32
      %132 = vector.broadcast %cst_103 : f32 to vector<3x1xf32>
      %c0_104 = arith.constant 0 : index
      %c0_105 = arith.constant 0 : index
      %133 = vector.load %arg15[%c0_104, %c0_105] : memref<3x1xf32, #tpu.memory_space<vmem>>, vector<3x1xf32>
      tpu.vector_store %arg15[%c0_104, %c0_105], %132 {strides = array<i32>} : memref<3x1xf32, #tpu.memory_space<vmem>>, vector<3x1xf32>,
      %cst_106 = arith.constant 0.000000e+00 : f32
      %134 = vector.broadcast %cst_106 : f32 to vector<3x32xf32>
      %c0_107 = arith.constant 0 : index
      %c0_108 = arith.constant 0 : index
      %135 = vector.load %arg16[%c0_107, %c0_108] : memref<3x32xf32, #tpu.memory_space<vmem>>, vector<3x32xf32>
      tpu.vector_store %arg16[%c0_107, %c0_108], %134 {strides = array<i32>} : memref<3x32xf32, #tpu.memory_space<vmem>>, vector<3x32xf32>,
    } else {
    }
    %c0 = arith.constant 0 : index
    %c0_1 = arith.constant 0 : index
    %3 = vector.load %arg12[%c0, %c0_1] : memref<3x32xf32, #tpu.memory_space<vmem>>, vector<3x32xf32>
    %c0_2 = arith.constant 0 : index
    %c0_3 = arith.constant 0 : index
    %4 = vector.load %arg2[%c0_2, %c0_3] : memref<128x32xf32, #tpu.memory_space<vmem>>, vector<128x32xf32>
    %c0_4 = arith.constant 0 : index
    %c0_5 = arith.constant 0 : index
    %5 = vector.load %arg3[%c0_4, %c0_5] : memref<1x128xi32, #tpu.memory_space<vmem>>, vector<1x128xi32>
    %6 = tpu.iota {dimensions = array<i32: 0>} : vector<3x128xi32>
    %7 = vector.broadcast %5 : vector<1x128xi32> to vector<3x128xi32>
    %8 = arith.cmpi eq, %7, %6 : vector<3x128xi32>
    %cst = arith.constant dense<0.000000e+00> : vector<3x128xf32>
    %9 = tpu.matmul %3, %4, %cst {dimension_numbers = #tpu.dot_dimension_numbers<[1], [1], [0], [0], [0, 0, 1, 0], [], []>} : vector<3x32xf32>, vector<128x32xf32>, vector<3x128xf32> -> vector<3x128xf32>
    %cst_6 = arith.constant -1.000000e+30 : f32
    %10 = vector.broadcast %cst_6 : f32 to vector<3x128xf32>
    %11 = arith.select %8, %9, %10 : vector<3x128xi1>, vector<3x128xf32>
    %c0_7 = arith.constant 0 : index
    %c0_8 = arith.constant 0 : index
    %12 = vector.load %arg14[%c0_7, %c0_8] : memref<3x1xf32, #tpu.memory_space<vmem>>, vector<3x1xf32>
    %cst_9 = arith.constant dense<0xFF800000> : vector<3xf32>
    %13 = vector.multi_reduction <maximumf>, %11, %cst_9 [1] : vector<3x128xf32> to vector<3xf32>
    %14 = vector.shape_cast %13 : vector<3xf32> to vector<3x1xf32>
    %15 = arith.maximumf %12, %14 : vector<3x1xf32>
    %16 = arith.subf %12, %15 : vector<3x1xf32>
    %17 = math.exp %16 : vector<3x1xf32>
    %18 = vector.broadcast %15 : vector<3x1xf32> to vector<3x128xf32>
    %19 = arith.subf %11, %18 : vector<3x128xf32>
    %20 = math.exp %19 : vector<3x128xf32>
    %cst_10 = arith.constant 0.000000e+00 : f32
    %21 = vector.broadcast %cst_10 : f32 to vector<3x128xf32>
    %22 = arith.select %8, %20, %21 : vector<3x128xi1>, vector<3x128xf32>
    %c0_11 = arith.constant 0 : index
    %c0_12 = arith.constant 0 : index
    %23 = vector.load %arg15[%c0_11, %c0_12] : memref<3x1xf32, #tpu.memory_space<vmem>>, vector<3x1xf32>
    %24 = arith.mulf %17, %23 : vector<3x1xf32>
    %cst_13 = arith.constant dense<0.000000e+00> : vector<3xf32>
    %25 = vector.multi_reduction <add>, %22, %cst_13 [1] : vector<3x128xf32> to vector<3xf32>
    %26 = vector.shape_cast %25 : vector<3xf32> to vector<3x1xf32>
    %27 = arith.addf %24, %26 : vector<3x1xf32>
    %c0_14 = arith.constant 0 : index
    %c0_15 = arith.constant 0 : index
    %28 = vector.load %arg15[%c0_14, %c0_15] : memref<3x1xf32, #tpu.memory_space<vmem>>, vector<3x1xf32>
    tpu.vector_store %arg15[%c0_14, %c0_15], %27 {strides = array<i32>} : memref<3x1xf32, #tpu.memory_space<vmem>>, vector<3x1xf32>,
    %c0_16 = arith.constant 0 : index
    %c0_17 = arith.constant 0 : index
    %29 = vector.load %arg16[%c0_16, %c0_17] : memref<3x32xf32, #tpu.memory_space<vmem>>, vector<3x32xf32>
    %30 = vector.broadcast %17 : vector<3x1xf32> to vector<3x32xf32>
    %31 = arith.mulf %30, %29 : vector<3x32xf32>
    %cst_18 = arith.constant dense<0.000000e+00> : vector<3x32xf32>
    %32 = tpu.matmul %22, %4, %cst_18 {dimension_numbers = #tpu.dot_dimension_numbers<[1], [0], [0], [1], [0, 0, 1, 1], [], []>} : vector<3x128xf32>, vector<128x32xf32>, vector<3x32xf32> -> vector<3x32xf32>
    %33 = arith.addf %31, %32 : vector<3x32xf32>
    %c0_19 = arith.constant 0 : index
    %c0_20 = arith.constant 0 : index
    %34 = vector.load %arg16[%c0_19, %c0_20] : memref<3x32xf32, #tpu.memory_space<vmem>>, vector<3x32xf32>
    tpu.vector_store %arg16[%c0_19, %c0_20], %33 {strides = array<i32>} : memref<3x32xf32, #tpu.memory_space<vmem>>, vector<3x32xf32>,
    %c0_21 = arith.constant 0 : index
    %c0_22 = arith.constant 0 : index
    %35 = vector.load %arg14[%c0_21, %c0_22] : memref<3x1xf32, #tpu.memory_space<vmem>>, vector<3x1xf32>
    tpu.vector_store %arg14[%c0_21, %c0_22], %15 {strides = array<i32>} : memref<3x1xf32, #tpu.memory_space<vmem>>, vector<3x1xf32>,
    %c1_i32 = arith.constant 1 : i32
    %36 = arith.cmpi eq, %arg1, %c1_i32 : i32
    %37 = arith.extui %36 : i1 to i32
    %c0_i32_23 = arith.constant 0 : i32
    %38 = arith.cmpi ne, %37, %c0_i32_23 : i32
    scf.if %38 {
      %c0_24 = arith.constant 0 : index
      %c0_25 = arith.constant 0 : index
      %39 = vector.load %arg16[%c0_24, %c0_25] : memref<3x32xf32, #tpu.memory_space<vmem>>, vector<3x32xf32>
      %c0_26 = arith.constant 0 : index
      %c0_27 = arith.constant 0 : index
      %40 = vector.load %arg15[%c0_26, %c0_27] : memref<3x1xf32, #tpu.memory_space<vmem>>, vector<3x1xf32>
      %cst_28 = arith.constant 1.000000e-16 : f32
      %41 = vector.broadcast %cst_28 : f32 to vector<3x1xf32>
      %42 = arith.addf %40, %41 : vector<3x1xf32>
      %43 = tpu.reciprocal %42 {approx = true} : vector<3x1xf32> -> vector<3x1xf32>
      %44 = vector.broadcast %43 : vector<3x1xf32> to vector<3x32xf32>
      %45 = arith.mulf %39, %44 : vector<3x32xf32>
      %c0_29 = arith.constant 0 : index
      %c0_30 = arith.constant 0 : index
      %46 = vector.load %arg13[%c0_29, %c0_30] : memref<3x32xf32, #tpu.memory_space<vmem>>, vector<3x32xf32>
      tpu.vector_store %arg13[%c0_29, %c0_30], %45 {strides = array<i32>} : memref<3x32xf32, #tpu.memory_space<vmem>>, vector<3x32xf32>,
      %c2_i32 = arith.constant 2 : i32
      %47 = arith.cmpi eq, %arg0, %c2_i32 : i32
      %48 = arith.extui %47 : i1 to i32
      %c0_i32_31 = arith.constant 0 : i32
      %49 = arith.cmpi ne, %48, %c0_i32_31 : i32
      scf.if %49 {
        %c0_32 = arith.constant 0 : index
        %c0_33 = arith.constant 0 : index
        %50 = vector.load %arg12[%c0_32, %c0_33] : memref<3x32xf32, #tpu.memory_space<vmem>>, vector<3x32xf32>
        %c0_34 = arith.constant 0 : index
        %c0_35 = arith.constant 0 : index
        %51 = vector.load %arg8[%c0_34, %c0_35] : memref<3x32xf32, #tpu.memory_space<vmem>>, vector<3x32xf32>
        tpu.vector_store %arg8[%c0_34, %c0_35], %50 {strides = array<i32>} : memref<3x32xf32, #tpu.memory_space<vmem>>, vector<3x32xf32>,
        %c0_36 = arith.constant 0 : index
        %c0_37 = arith.constant 0 : index
        %52 = vector.load %arg9[%c0_36, %c0_37] : memref<3x32xf32, #tpu.memory_space<vmem>>, vector<3x32xf32>
        tpu.vector_store %arg9[%c0_36, %c0_37], %45 {strides = array<i32>} : memref<3x32xf32, #tpu.memory_space<vmem>>, vector<3x32xf32>,
      } else {
      }
    } else {
    }
    return
  }
  func.func @transform_0(%arg0: i32, %arg1: i32) -> (i32, i32) {
    %c0_i32 = arith.constant 0 : i32
    %c0_i32_0 = arith.constant 0 : i32
    return %arg1, %c0_i32 : i32, i32
  }
  func.func @transform_1(%arg0: i32, %arg1: i32) -> (i32, i32) {
    %c0_i32 = arith.constant 0 : i32
    %c0_i32_0 = arith.constant 0 : i32
    return %c0_i32, %arg1 : i32, i32
  }
  func.func @transform_2(%arg0: i32, %arg1: i32) -> (i32, i32, i32) {
    %c0_i32 = arith.constant 0 : i32
    %c0_i32_0 = arith.constant 0 : i32
    %c0_i32_1 = arith.constant 0 : i32
    %c0_i32_2 = arith.constant 0 : i32
    return %c0_i32, %c0_i32_0, %c0_i32_1 : i32, i32, i32
  }
  func.func @transform_3(%arg0: i32, %arg1: i32) -> (i32, i32, i32) {
    %c0_i32 = arith.constant 0 : i32
    %c0_i32_0 = arith.constant 0 : i32
    %c0_i32_1 = arith.constant 0 : i32
    %c0_i32_2 = arith.constant 0 : i32
    return %c0_i32, %c0_i32_0, %c0_i32_1 : i32, i32, i32
  }
  func.func @transform_4(%arg0: i32, %arg1: i32) -> (i32, i32, i32) {
    %c0_i32 = arith.constant 0 : i32
    %c0_i32_0 = arith.constant 0 : i32
    %c0_i32_1 = arith.constant 0 : i32
    %c0_i32_2 = arith.constant 0 : i32
    return %c0_i32, %c0_i32_0, %c0_i32_1 : i32, i32, i32
  }
  func.func @transform_5(%arg0: i32, %arg1: i32) -> (i32, i32, i32) {
    %c0_i32 = arith.constant 0 : i32
    %c0_i32_0 = arith.constant 0 : i32
    %c0_i32_1 = arith.constant 0 : i32
    %c0_i32_2 = arith.constant 0 : i32
    return %c0_i32, %c0_i32_0, %c0_i32_1 : i32, i32, i32
  }
  func.func @transform_6(%arg0: i32, %arg1: i32) -> (i32, i32) {
    %c0_i32 = arith.constant 0 : i32
    %c0_i32_0 = arith.constant 0 : i32
    %c0_i32_1 = arith.constant 0 : i32
    return %c0_i32, %c0_i32_0 : i32, i32
  }
  func.func @transform_7(%arg0: i32, %arg1: i32) -> (i32, i32) {
    %c0_i32 = arith.constant 0 : i32
    %c0_i32_0 = arith.constant 0 : i32
    %c0_i32_1 = arith.constant 0 : i32
    return %c0_i32, %c0_i32_0 : i32, i32
  }
}

</mosaic_0001>

<llo_original>
// kernel: tpu_custom_call.1
$region0: #{tpu_custom_call.1}
  #allocation0 [shape = 'u32[]', space=smem, size = 0x4, offset = 0x4, fixed_abs, tag = 'smem constant byte address 0x4 - core index']
  #allocation1 [shape = 'u32[144,128]{1,0:T(1,128)}', space=vmem, size = 0x12000, scoped, tag = 'internal scratch']
  #allocation2 [shape = 'f32[3,32]{1,0:T(4,128)}', space=vmem, size = 0x800, scoped, tag = 'scratch operand']
  #allocation3 [shape = 'f32[3,32]{1,0:T(4,128)}', space=vmem, size = 0x800, scoped, tag = 'scratch operand']
  #allocation4 [shape = 'f32[3,32]{1,0:T(4,128)}', space=vmem, size = 0x800, scoped, tag = 'scratch operand']
  #allocation5 [shape = 'f32[3,32]{1,0:T(4,128)}', space=vmem, size = 0x800, scoped, tag = 'scratch operand']
  #allocation6 [shape = 'f32[3,1]{1,0:T(4,128)}', space=vmem, size = 0x800, scoped, tag = 'scratch operand']
  #allocation7 [shape = 'f32[3,1]{1,0:T(4,128)}', space=vmem, size = 0x800, scoped, tag = 'scratch operand']
  #allocation8 [shape = 'f32[3,32]{1,0:T(4,128)}', space=vmem, size = 0x800, scoped, tag = 'scratch operand']
  %s0 = inlined_call_operand.vmem [shape: f32[256,32], index: 0, kind: input, shape index: {}]
  %s1 = inlined_call_operand.vmem [shape: s32[1,256], index: 1, kind: input, shape index: {}]
  %s2 = inlined_call_operand.vmem [shape: f32[4,32,32], index: 2, kind: input, shape index: {}]
  %s3 = inlined_call_operand.vmem [shape: f32[4,32,32], index: 3, kind: input, shape index: {}]
  %s4 = inlined_call_operand.hbm [shape: f32[4,32,32], index: 4, kind: input, shape index: {}]
  %s5 = inlined_call_operand.vmem [shape: f32[4,1,32], index: 5, kind: input, shape index: {}]
  %s6 = inlined_call_operand.hbm [shape: f32[3,32], index: 6, kind: output, shape index: {0}]
  %s7 = inlined_call_operand.hbm [shape: f32[3,32], index: 7, kind: output, shape index: {1}]
  %8 = xla_tuple %s6, %s7
  %s9 = sld [smem:[#allocation0]]
  $region85: #{tpu_custom_call.1} parent=0
    _
  %s11 = ssub.s32 1, %s9
  %s12 = scalar_select 0, %s11, %s9
  $region1: #{tpu_custom_call.1} parent=0
    #allocation9 [shape = 'u8[65536]{0}', space=vmem, size = 0x10000, scoped, tag = 'input window, operand 4, single buffered']
    #allocation10 [shape = 's32[2]{0}', space=sflag, size = 0x8, scoped, tag = 'scoped memory for tpu_custom_call.1']
    #allocation11 [shape = 's32[2]{0}', space=sflag, size = 0x8, scoped, tag = 'scoped memory for tpu_custom_call.1']
    #allocation12 [shape = 'u8[2048]{0}', space=vmem, size = 0x800, scoped, tag = 'output window, operand 0, single buffered']
    #allocation13 [shape = 'u8[2048]{0}', space=vmem, size = 0x800, scoped, tag = 'output window, operand 1, single buffered']
    #allocation14 [shape = 's32[1]{0}', space=sflag, size = 0x4, scoped, tag = 'scoped memory for tpu_custom_call.1']
    %13 = vsyncpa [#allocation10], 0
    %14 = vsyncpa [#allocation11], 0
    %15 = vsyncpa [#allocation14], 0
    loop: start=0, step=1, limit=8
    $region2: #{tpu_custom_call.1} parent=1 // loop_pre_header
      _
    $region3: #{tpu_custom_call.1} parent=1 // loop_header
      %s17 = sphi 0, %s21
      %p18 = scmp.ge.s32.totalorder %s17, 8
      %s24 = sphi 0, %s36
      %s25 = sphi 0, %s32
      %s26 = sphi 0, %s24
      %s27 = sphi 0, %s25
      %s28 = sphi 0, %s26
      %s29 = sphi 0, %s27
      %s39 = sphi 0, %s41
      %s42 = sphi 0, %s39
      %s43 = sphi 0, %s42
      %s59 = sphi 0, %s43
      %s65 = sphi 0, %s67
      %s68 = sphi 0, %s65
      %s69 = sphi 0, %s68
      %s85 = sphi 0, %s69
      %s89 = sphi 0, %s89
      %s91 = sphi 0, %s89
      %s92 = sphi 0, %s91
      %s106 = sphi 0, %s92
      %s110 = sphi 0, %s110
      %s112 = sphi 0, %s110
      %s113 = sphi 0, %s112
      %s127 = sphi 0, %s113
      %s131 = sphi 0, %s131
      %s133 = sphi 0, %s131
      %s134 = sphi 0, %s133
      %s148 = sphi 0, %s134
      %s152 = sphi 0, %s152
      %s154 = sphi 0, %s152
      %s155 = sphi 0, %s154
      %s169 = sphi 0, %s155
      %s173 = sphi 0, %s173
      %s175 = sphi 0, %s173
      %s176 = sphi 0, %s175
      %s190 = sphi 0, %s176
      %s194 = sphi 0, %s194
      %s196 = sphi 0, %s194
      %s197 = sphi 0, %s196
      %s211 = sphi 0, %s197
    $region4: #{tpu_custom_call.1} parent=1 // loop_header_branch
      %20 = sbr.rel (%p18) target = $region8
    $region5: #{tpu_custom_call.1} parent=1 // loop_body
      %s22 = ssub.s32 %s17, 1
      %s23 = ssub.s32 %s17, 2
      %s30 = sadd.s32 1, %s25
      %p31 = scmp.ge.s32.totalorder %s30, 2
      %s32 = scalar_select %p31, 0, %s30
      %s33 = sadd.s32 1, %s24
      %s34 = scalar_select %p31, %s33, %s24
      %p35 = scmp.ge.s32.totalorder %s34, 3
      %s36 = scalar_select %p35, 0, %s34
      %s37 = ssub.s32 %s25, %s32
      %p38 = scmp.eq.s32.totalorder %s37, 0
      %s40 = sadd.s32 %s39, 1
      %s41 = scalar_select %p38, %s39, %s40
      %p44 = pneg %p38
      %p45 = scmp.eq.s32.totalorder %s17, 5
      %p46 = por %p44, %p45
      %p47 = scmp.ne.s32.totalorder %s39, %s42
      %p48 = scmp.eq.s32.totalorder %s17, 0
      %p49 = por %p47, %p48
      %p50 = scmp.ne.s32.totalorder %s39, %s42
      %p51 = scmp.eq.s32.totalorder %s22, 5
      %p52 = por %p50, %p51
      %p53 = scmp.ne.s32.totalorder %s42, %s43
      %p54 = scmp.eq.s32.totalorder %s22, 0
      %p55 = por %p53, %p54
      %p56 = scmp.ne.s32.totalorder %s42, %s43
      %p57 = scmp.eq.s32.totalorder %s23, 5
      %p58 = por %p56, %p57
      %p60 = scmp.ne.s32.totalorder %s43, %s59
      %p61 = scmp.eq.s32.totalorder %s23, 0
      %p62 = por %p60, %p61
      %s63 = ssub.s32 %s25, %s32
      %p64 = scmp.eq.s32.totalorder %s63, 0
      %s66 = sadd.s32 %s65, 1
      %s67 = scalar_select %p64, %s65, %s66
      %p70 = pneg %p64
      %p71 = scmp.eq.s32.totalorder %s17, 5
      %p72 = por %p70, %p71
      %p73 = scmp.ne.s32.totalorder %s65, %s68
      %p74 = scmp.eq.s32.totalorder %s17, 0
      %p75 = por %p73, %p74
      %p76 = scmp.ne.s32.totalorder %s65, %s68
      %p77 = scmp.eq.s32.totalorder %s22, 5
      %p78 = por %p76, %p77
      %p79 = scmp.ne.s32.totalorder %s68, %s69
      %p80 = scmp.eq.s32.totalorder %s22, 0
      %p81 = por %p79, %p80
      %p82 = scmp.ne.s32.totalorder %s68, %s69
      %p83 = scmp.eq.s32.totalorder %s23, 5
      %p84 = por %p82, %p83
      %p86 = scmp.ne.s32.totalorder %s69, %s85
      %p87 = scmp.eq.s32.totalorder %s23, 0
      %p88 = por %p86, %p87
      %s90 = sadd.s32 %s89, 1
      %p93 = scmp.eq.s32.totalorder %s17, 5
      %p94 = scmp.ne.s32.totalorder %s89, %s91
      %p95 = scmp.eq.s32.totalorder %s17, 0
      %p96 = por %p94, %p95
      %p97 = scmp.ne.s32.totalorder %s89, %s91
      %p98 = scmp.eq.s32.totalorder %s22, 5
      %p99 = por %p97, %p98
      %p100 = scmp.ne.s32.totalorder %s91, %s92
      %p101 = scmp.eq.s32.totalorder %s22, 0
      %p102 = por %p100, %p101
      %p103 = scmp.ne.s32.totalorder %s91, %s92
      %p104 = scmp.eq.s32.totalorder %s23, 5
      %p105 = por %p103, %p104
      %p107 = scmp.ne.s32.totalorder %s92, %s106
      %p108 = scmp.eq.s32.totalorder %s23, 0
      %p109 = por %p107, %p108
      %s111 = sadd.s32 %s110, 1
      %p114 = scmp.eq.s32.totalorder %s17, 5
      %p115 = scmp.ne.s32.totalorder %s110, %s112
      %p116 = scmp.eq.s32.totalorder %s17, 0
      %p117 = por %p115, %p116
      %p118 = scmp.ne.s32.totalorder %s110, %s112
      %p119 = scmp.eq.s32.totalorder %s22, 5
      %p120 = por %p118, %p119
      %p121 = scmp.ne.s32.totalorder %s112, %s113
      %p122 = scmp.eq.s32.totalorder %s22, 0
      %p123 = por %p121, %p122
      %p124 = scmp.ne.s32.totalorder %s112, %s113
      %p125 = scmp.eq.s32.totalorder %s23, 5
      %p126 = por %p124, %p125
      %p128 = scmp.ne.s32.totalorder %s113, %s127
      %p129 = scmp.eq.s32.totalorder %s23, 0
      %p130 = por %p128, %p129
      %s132 = sadd.s32 %s131, 1
      %p135 = scmp.eq.s32.totalorder %s17, 5
      %p136 = scmp.ne.s32.totalorder %s131, %s133
      %p137 = scmp.eq.s32.totalorder %s17, 0
      %p138 = por %p136, %p137
      %p139 = scmp.ne.s32.totalorder %s131, %s133
      %p140 = scmp.eq.s32.totalorder %s22, 5
      %p141 = por %p139, %p140
      %p142 = scmp.ne.s32.totalorder %s133, %s134
      %p143 = scmp.eq.s32.totalorder %s22, 0
      %p144 = por %p142, %p143
      %p145 = scmp.ne.s32.totalorder %s133, %s134
      %p146 = scmp.eq.s32.totalorder %s23, 5
      %p147 = por %p145, %p146
      %p149 = scmp.ne.s32.totalorder %s134, %s148
      %p150 = scmp.eq.s32.totalorder %s23, 0
      %p151 = por %p149, %p150
      %s153 = sadd.s32 %s152, 1
      %p156 = scmp.eq.s32.totalorder %s17, 5
      %p157 = scmp.ne.s32.totalorder %s152, %s154
      %p158 = scmp.eq.s32.totalorder %s17, 0
      %p159 = por %p157, %p158
      %p160 = scmp.ne.s32.totalorder %s152, %s154
      %p161 = scmp.eq.s32.totalorder %s22, 5
      %p162 = por %p160, %p161
      %p163 = scmp.ne.s32.totalorder %s154, %s155
      %p164 = scmp.eq.s32.totalorder %s22, 0
      %p165 = por %p163, %p164
      %p166 = scmp.ne.s32.totalorder %s154, %s155
      %p167 = scmp.eq.s32.totalorder %s23, 5
      %p168 = por %p166, %p167
      %p170 = scmp.ne.s32.totalorder %s155, %s169
      %p171 = scmp.eq.s32.totalorder %s23, 0
      %p172 = por %p170, %p171
      %s174 = sadd.s32 %s173, 1
      %p177 = scmp.eq.s32.totalorder %s17, 5
      %p178 = scmp.ne.s32.totalorder %s173, %s175
      %p179 = scmp.eq.s32.totalorder %s17, 0
      %p180 = por %p178, %p179
      %p181 = scmp.ne.s32.totalorder %s173, %s175
      %p182 = scmp.eq.s32.totalorder %s22, 5
      %p183 = por %p181, %p182
      %p184 = scmp.ne.s32.totalorder %s175, %s176
      %p185 = scmp.eq.s32.totalorder %s22, 0
      %p186 = por %p184, %p185
      %p187 = scmp.ne.s32.totalorder %s175, %s176
      %p188 = scmp.eq.s32.totalorder %s23, 5
      %p189 = por %p187, %p188
      %p191 = scmp.ne.s32.totalorder %s176, %s190
      %p192 = scmp.eq.s32.totalorder %s23, 0
      %p193 = por %p191, %p192
      %s195 = sadd.s32 %s194, 1
      %p198 = scmp.eq.s32.totalorder %s17, 5
      %p199 = scmp.ne.s32.totalorder %s194, %s196
      %p200 = scmp.eq.s32.totalorder %s17, 0
      %p201 = por %p199, %p200
      %p202 = scmp.ne.s32.totalorder %s194, %s196
      %p203 = scmp.eq.s32.totalorder %s22, 5
      %p204 = por %p202, %p203
      %p205 = scmp.ne.s32.totalorder %s196, %s197
      %p206 = scmp.eq.s32.totalorder %s22, 0
      %p207 = por %p205, %p206
      %p208 = scmp.ne.s32.totalorder %s196, %s197
      %p209 = scmp.eq.s32.totalorder %s23, 5
      %p210 = por %p208, %p209
      %p212 = scmp.ne.s32.totalorder %s197, %s211
      %p213 = scmp.eq.s32.totalorder %s23, 0
      %p214 = por %p212, %p213
      %p215 = scmp.le.s32.totalorder 1, %s17
      %p216 = scmp.lt.s32.totalorder %s17, 7
      %p217 = pnand %p215, %p216
      %p218 = pneg %p217
      // Predicated region
      $region9: #{tpu_custom_call.1} parent=5 // pred_check
        _
      $region10: #{tpu_custom_call.1} parent=5 // pred_check_branch
        %220 = sbr.rel (%p217) target = $region12
      $region11: #{tpu_custom_call.1} parent=5 // pred_region
        %s221 = ssub.s32 %s17, 1
        // Predicated region
        $region13: #{tpu_custom_call.1} parent=11 // pred_check
          %p222 = pneg %p102
        $region14: #{tpu_custom_call.1} parent=11 // pred_check_branch
          %224 = sbr.rel (%p222) target = $region16
        $region15: #{tpu_custom_call.1} parent=11 // pred_region
          _
        $region16: #{tpu_custom_call.1} parent=11 // pred_fallthru
          _
        // Predicated region
        $region17: #{tpu_custom_call.1} parent=11 // pred_check
          %p225 = pneg %p123
        $region18: #{tpu_custom_call.1} parent=11 // pred_check_branch
          %227 = sbr.rel (%p225) target = $region20
        $region19: #{tpu_custom_call.1} parent=11 // pred_region
          _
        $region20: #{tpu_custom_call.1} parent=11 // pred_fallthru
          _
        // Predicated region
        $region21: #{tpu_custom_call.1} parent=11 // pred_check
          %p228 = pneg %p144
        $region22: #{tpu_custom_call.1} parent=11 // pred_check_branch
          %230 = sbr.rel (%p228) target = $region24
        $region23: #{tpu_custom_call.1} parent=11 // pred_region
          %s232 = ssub.s32 2048, 2048
          %233 = vsyncadd [#allocation10], %s232
          %s234 = sshll.u32 [#allocation9], 4
          %s235 = int_to_ptr.vmem [resolvable:$true] %s234
          %240 = dma.hbm_to_vmem [thread:$0]  %s4, 2048, %s235, [#allocation10], 128, 128, 8
        $region24: #{tpu_custom_call.1} parent=11 // pred_fallthru
          _
        // Predicated region
        $region25: #{tpu_custom_call.1} parent=11 // pred_check
          %p241 = pneg %p165
        $region26: #{tpu_custom_call.1} parent=11 // pred_check_branch
          %243 = sbr.rel (%p241) target = $region28
        $region27: #{tpu_custom_call.1} parent=11 // pred_region
          _
        $region28: #{tpu_custom_call.1} parent=11 // pred_fallthru
          _
      $region12: #{tpu_custom_call.1} parent=5 // pred_fallthru
        _
      %p244 = scmp.lt.s32.totalorder %s17, 6
      // Predicated region
      $region29: #{tpu_custom_call.1} parent=5 // pred_check
        %p245 = pneg %p244
      $region30: #{tpu_custom_call.1} parent=5 // pred_check_branch
        %247 = sbr.rel (%p245) target = $region32
      $region31: #{tpu_custom_call.1} parent=5 // pred_region
        // Predicated region
        $region33: #{tpu_custom_call.1} parent=31 // pred_check
          %p248 = pneg %p49
        $region34: #{tpu_custom_call.1} parent=31 // pred_check_branch
          %250 = sbr.rel (%p248) target = $region36
        $region35: #{tpu_custom_call.1} parent=31 // pred_region
          %s251 = smul.u32 16, %s25
          %p252 = scmp.lt.s32.totalorder %s251, 31
          %s253 = scalar_select %p252, %s251, 31
          %s254 = smul.addr %s253, 8
          %s255 = scalar_lea.vmem %s0, %s254
          %s256 = smul.u32 16, %s25
        $region36: #{tpu_custom_call.1} parent=31 // pred_fallthru
          _
        // Predicated region
        $region37: #{tpu_custom_call.1} parent=31 // pred_check
          %p257 = pneg %p75
        $region38: #{tpu_custom_call.1} parent=31 // pred_check_branch
          %259 = sbr.rel (%p257) target = $region40
        $region39: #{tpu_custom_call.1} parent=31 // pred_region
          %p260 = scmp.lt.s32.totalorder %s25, 1
          %s261 = scalar_select %p260, %s25, 1
          %s262 = scalar_lea.vmem %s1, %s261
        $region40: #{tpu_custom_call.1} parent=31 // pred_fallthru
          _
      $region32: #{tpu_custom_call.1} parent=5 // pred_fallthru
        _
      %p263 = scmp.le.s32.totalorder 1, %s17
      %p264 = scmp.lt.s32.totalorder %s17, 7
      %p265 = pnand %p263, %p264
      %p266 = pneg %p265
      // Predicated region
      $region41: #{tpu_custom_call.1} parent=5 // pred_check
        _
      $region42: #{tpu_custom_call.1} parent=5 // pred_check_branch
        %268 = sbr.rel (%p265) target = $region44
      $region43: #{tpu_custom_call.1} parent=5 // pred_region
        %s269 = ssub.s32 %s17, 1
        // Predicated region
        $region45: #{tpu_custom_call.1} parent=43 // pred_check
          %p270 = pneg %p144
        $region46: #{tpu_custom_call.1} parent=43 // pred_check_branch
          %272 = sbr.rel (%p270) target = $region48
        $region47: #{tpu_custom_call.1} parent=43 // pred_region
          %273 = dma.done [#allocation10], 2048
        $region48: #{tpu_custom_call.1} parent=43 // pred_fallthru
          _
        %s274 = smul.u32 16, %s27
        %p275 = scmp.lt.s32.totalorder %s274, 31
        %s276 = scalar_select %p275, %s274, 31
        %s277 = smul.addr %s276, 8
        %s278 = scalar_lea.vmem %s0, %s277
        %p279 = pneg %p55
        %p280 = pneg %p52
        %p281 = scmp.lt.s32.totalorder %s27, 1
        %s282 = scalar_select %p281, %s27, 1
        %s283 = scalar_lea.vmem %s1, %s282
        %p284 = pneg %p81
        %p285 = pneg %p78
        %p286 = pneg %p102
        %p287 = pneg %p99
        %p288 = pneg %p123
        %p289 = pneg %p120
        %p290 = pneg %p144
        %p291 = pneg %p141
        %p292 = pneg %p165
        %p293 = pneg %p162
        %p294 = pneg %p186
        %p295 = pneg %p183
        %p296 = pneg %p207
        %p297 = pneg %p204
        %s298 = smul.u32 16, %s27
        %p299 = scmp.lt.s32.totalorder %s298, 31
        %s300 = scalar_select %p299, %s298, 31
        %s301 = smul.addr %s300, 8
        %s302 = scalar_lea.vmem %s0, %s301
        %s303 = smul.u32 16, %s27
        %p304 = scmp.lt.s32.totalorder %s27, 1
        %s305 = scalar_select %p304, %s27, 1
        %s306 = scalar_lea.vmem %s1, %s305
        %p307 = scmp.eq.s32.totalorder %s27, 0
        // Predicated region
        $region49: #{tpu_custom_call.1} parent=43 // pred_check
          %p308 = pneg %p307
        $region50: #{tpu_custom_call.1} parent=43 // pred_check_branch
          %310 = sbr.rel (%p308) target = $region52
        $region51: #{tpu_custom_call.1} parent=43 // pred_region
          %p311 = scmp.eq.s32.totalorder %s26, 0
          // Predicated region
          $region53: #{tpu_custom_call.1} parent=51 // pred_check
            %p312 = pneg %p311
          $region54: #{tpu_custom_call.1} parent=51 // pred_check_branch
            %314 = sbr.rel (%p312) target = $region56
          $region55: #{tpu_custom_call.1} parent=51 // pred_region
            %vm315 = vcmask 256000
            %316 = vst.msk [vmem:[#allocation2] sm:$0x7] %vm315, 0.0
            %317 = vst.msk [vmem:[#allocation3] sm:$0x7] %vm315, 0.0
            %318 = vst.msk [vmem:[#allocation4] sm:$0x7] %vm315, 0.0
            %319 = vst.msk [vmem:[#allocation5] sm:$0x7] %vm315, 0.0
          $region56: #{tpu_custom_call.1} parent=51 // pred_fallthru
            _
          %v320 = vld [vmem:[#allocation4] sm:$0x7]
          %v321 = vld [vmem:[#allocation5] sm:$0x7]
          %v322 = vld [vmem:[#allocation2] sm:$0x7]
          %v323 = vld [vmem:[#allocation3] sm:$0x7]
          %v324 = vld [vmem:[%s2] sm:$0xff]
          %v325 = vld [vmem:[%s2 + $0x8] sm:$0xff]
          %v326 = vld [vmem:[%s2 + $0x10] sm:$0xff]
          %v327 = vld [vmem:[%s2 + $0x18] sm:$0xff]
          %v328 = vld [vmem:[%s3] sm:$0xff]
          %v329 = vld [vmem:[%s3 + $0x8] sm:$0xff]
          %v330 = vld [vmem:[%s3 + $0x10] sm:$0xff]
          %v331 = vld [vmem:[%s3 + $0x18] sm:$0xff]
          %vm332 = vcmask 261120
          %v334 = vsel %vm332, %v321, 0
          %336 = vmatprep.subr.mxu0 0.0
          %337 = vmatpush1.msra.mxu0 %v328
          %338 = vmatprep.subr.mxu0 0.0
          %339 = vmatpush1.msra.mxu0 %v329
          %340 = vmatprep.subr.mxu0 0.0
          %341 = vmatpush1.msra.mxu0 %v330
          %342 = vmatprep.subr.mxu0 0.0
          %343 = vmatpush1.msra.mxu0 %v331
          %344 = vmatprep.subr.mxu0 0.0
          %345 = vmatpush1.msra.mxu0 0.0
          %346 = vmatprep.subr.mxu0 0.0
          %347 = vmatpush1.msra.mxu0 0.0
          %348 = vmatprep.subr.mxu0 0.0
          %349 = vmatpush1.msra.mxu0 0.0
          %350 = vmatprep.subr.mxu0 0.0
          %351 = vmatpush1.msra.mxu0 0.0
          %352 = vmatprep.subr.mxu0 0.0
          %353 = vmatpush1.msra.mxu0 0.0
          %354 = vmatprep.subr.mxu0 0.0
          %355 = vmatpush1.msra.mxu0 0.0
          %356 = vmatprep.subr.mxu0 0.0
          %357 = vmatpush1.msra.mxu0 0.0
          %358 = vmatprep.subr.mxu0 0.0
          %359 = vmatpush1.msra.mxu0 0.0
          %360 = vmatprep.subr.mxu0 0.0
          %361 = vmatpush1.msra.mxu0 0.0
          %362 = vmatprep.subr.mxu0 0.0
          %363 = vmatpush1.msra.mxu0 0.0
          %364 = vmatprep.subr.mxu0 0.0
          %365 = vmatpush1.msra.mxu0 0.0
          %366 = vmatprep.subr.mxu0 0.0
          %367 = vmatpush1.msra.mxu0 0.0
          %368 = vmatprep.subr.mxu0 0.0
          %369 = vmatpush1.msra.mxu0 0.0
          %370 = vmatprep.subr.mxu0 0.0
          %371 = vmatpush1.msra.mxu0 0.0
          %372 = vmatprep.subr.mxu0 0.0
          %373 = vmatpush1.msra.mxu0 0.0
          %374 = vmatprep.subr.mxu0 0.0
          %375 = vmatpush1.msra.mxu0 0.0
          %376 = vmatprep.subr.mxu0 0.0
          %377 = vmatpush1.msra.mxu0 0.0
          %378 = vmatprep.subr.mxu0 0.0
          %379 = vmatpush1.msra.mxu0 0.0
          %380 = vmatprep.subr.mxu0 0.0
          %381 = vmatpush1.msra.mxu0 0.0
          %382 = vmatprep.subr.mxu0 0.0
          %383 = vmatpush1.msra.mxu0 0.0
          %384 = vmatprep.subr.mxu0 0.0
          %385 = vmatpush1.msra.mxu0 0.0
          %386 = vmatprep.subr.mxu0 0.0
          %387 = vmatpush1.msra.mxu0 0.0
          %388 = vmatprep.subr.mxu0 0.0
          %389 = vmatpush1.msra.mxu0 0.0
          %390 = vmatprep.subr.mxu0 0.0
          %391 = vmatpush1.msra.mxu0 0.0
          %392 = vmatprep.subr.mxu0 0.0
          %393 = vmatpush1.msra.mxu0 0.0
          %394 = vmatprep.subr.mxu0 0.0
          %395 = vmatpush1.msra.mxu0 0.0
          %396 = vmatprep.subr.mxu0 0.0
          %397 = vmatpush1.msra.mxu0 0.0
          %398 = vmatprep.subr.mxu0 0.0
          %399 = vmatpush1.msra.mxu0 0.0
          %400 = vmatprep.mubr.f32.mxu0 0.0
          %401 = vmatmul.mubr.f32.gmra.mrb[0].mxu0 %v334
          %v402 = vpop.f32.mrb[0].mxu0
          %v403 = vadd.f32 0.0, %v402
          %v404 = vpop.f32.mrb[0].mxu0
          %405 = vdwg.mxu0
          %v407 = vsel %vm332, %v320, 0
          %409 = vmatprep.subr.mxu0 0.0
          %410 = vmatpush1.msra.mxu0 %v324
          %411 = vmatprep.subr.mxu0 0.0
          %412 = vmatpush1.msra.mxu0 %v325
          %413 = vmatprep.subr.mxu0 0.0
          %414 = vmatpush1.msra.mxu0 %v326
          %415 = vmatprep.subr.mxu0 0.0
          %416 = vmatpush1.msra.mxu0 %v327
          %417 = vmatprep.subr.mxu0 0.0
          %418 = vmatpush1.msra.mxu0 0.0
          %419 = vmatprep.subr.mxu0 0.0
          %420 = vmatpush1.msra.mxu0 0.0
          %421 = vmatprep.subr.mxu0 0.0
          %422 = vmatpush1.msra.mxu0 0.0
          %423 = vmatprep.subr.mxu0 0.0
          %424 = vmatpush1.msra.mxu0 0.0
          %425 = vmatprep.subr.mxu0 0.0
          %426 = vmatpush1.msra.mxu0 0.0
          %427 = vmatprep.subr.mxu0 0.0
          %428 = vmatpush1.msra.mxu0 0.0
          %429 = vmatprep.subr.mxu0 0.0
          %430 = vmatpush1.msra.mxu0 0.0
          %431 = vmatprep.subr.mxu0 0.0
          %432 = vmatpush1.msra.mxu0 0.0
          %433 = vmatprep.subr.mxu0 0.0
          %434 = vmatpush1.msra.mxu0 0.0
          %435 = vmatprep.subr.mxu0 0.0
          %436 = vmatpush1.msra.mxu0 0.0
          %437 = vmatprep.subr.mxu0 0.0
          %438 = vmatpush1.msra.mxu0 0.0
          %439 = vmatprep.subr.mxu0 0.0
          %440 = vmatpush1.msra.mxu0 0.0
          %441 = vmatprep.subr.mxu0 0.0
          %442 = vmatpush1.msra.mxu0 0.0
          %443 = vmatprep.subr.mxu0 0.0
          %444 = vmatpush1.msra.mxu0 0.0
          %445 = vmatprep.subr.mxu0 0.0
          %446 = vmatpush1.msra.mxu0 0.0
          %447 = vmatprep.subr.mxu0 0.0
          %448 = vmatpush1.msra.mxu0 0.0
          %449 = vmatprep.subr.mxu0 0.0
          %450 = vmatpush1.msra.mxu0 0.0
          %451 = vmatprep.subr.mxu0 0.0
          %452 = vmatpush1.msra.mxu0 0.0
          %453 = vmatprep.subr.mxu0 0.0
          %454 = vmatpush1.msra.mxu0 0.0
          %455 = vmatprep.subr.mxu0 0.0
          %456 = vmatpush1.msra.mxu0 0.0
          %457 = vmatprep.subr.mxu0 0.0
          %458 = vmatpush1.msra.mxu0 0.0
          %459 = vmatprep.subr.mxu0 0.0
          %460 = vmatpush1.msra.mxu0 0.0
          %461 = vmatprep.subr.mxu0 0.0
          %462 = vmatpush1.msra.mxu0 0.0
          %463 = vmatprep.subr.mxu0 0.0
          %464 = vmatpush1.msra.mxu0 0.0
          %465 = vmatprep.subr.mxu0 0.0
          %466 = vmatpush1.msra.mxu0 0.0
          %467 = vmatprep.subr.mxu0 0.0
          %468 = vmatpush1.msra.mxu0 0.0
          %469 = vmatprep.subr.mxu0 0.0
          %470 = vmatpush1.msra.mxu0 0.0
          %471 = vmatprep.subr.mxu0 0.0
          %472 = vmatpush1.msra.mxu0 0.0
          %473 = vmatprep.mubr.f32.mxu0 0.0
          %474 = vmatmul.mubr.f32.gmra.mrb[0].mxu0 %v407
          %v475 = vpop.f32.mrb[0].mxu0
          %v476 = vadd.f32 %v403, %v475
          %v477 = vpop.f32.mrb[0].mxu0
          %478 = vdwg.mxu0
          %v479 = vld [vmem:[#allocation9] sm:$0xff]
          %v480 = vld [vmem:[#allocation9 + $0x8] sm:$0xff]
          %v481 = vld [vmem:[#allocation9 + $0x10] sm:$0xff]
          %v482 = vld [vmem:[#allocation9 + $0x18] sm:$0xff]
          %v484 = vsel %vm332, %v322, 0
          %486 = vmatprep.subr.mxu0 0.0
          %487 = vmatpush1.msra.mxu0 %v479
          %488 = vmatprep.subr.mxu0 0.0
          %489 = vmatpush1.msra.mxu0 %v480
          %490 = vmatprep.subr.mxu0 0.0
          %491 = vmatpush1.msra.mxu0 %v481
          %492 = vmatprep.subr.mxu0 0.0
          %493 = vmatpush1.msra.mxu0 %v482
          %494 = vmatprep.subr.mxu0 0.0
          %495 = vmatpush1.msra.mxu0 0.0
          %496 = vmatprep.subr.mxu0 0.0
          %497 = vmatpush1.msra.mxu0 0.0
          %498 = vmatprep.subr.mxu0 0.0
          %499 = vmatpush1.msra.mxu0 0.0
          %500 = vmatprep.subr.mxu0 0.0
          %501 = vmatpush1.msra.mxu0 0.0
          %502 = vmatprep.subr.mxu0 0.0
          %503 = vmatpush1.msra.mxu0 0.0
          %504 = vmatprep.subr.mxu0 0.0
          %505 = vmatpush1.msra.mxu0 0.0
          %506 = vmatprep.subr.mxu0 0.0
          %507 = vmatpush1.msra.mxu0 0.0
          %508 = vmatprep.subr.mxu0 0.0
          %509 = vmatpush1.msra.mxu0 0.0
          %510 = vmatprep.subr.mxu0 0.0
          %511 = vmatpush1.msra.mxu0 0.0
          %512 = vmatprep.subr.mxu0 0.0
          %513 = vmatpush1.msra.mxu0 0.0
          %514 = vmatprep.subr.mxu0 0.0
          %515 = vmatpush1.msra.mxu0 0.0
          %516 = vmatprep.subr.mxu0 0.0
          %517 = vmatpush1.msra.mxu0 0.0
          %518 = vmatprep.subr.mxu0 0.0
          %519 = vmatpush1.msra.mxu0 0.0
          %520 = vmatprep.subr.mxu0 0.0
          %521 = vmatpush1.msra.mxu0 0.0
          %522 = vmatprep.subr.mxu0 0.0
          %523 = vmatpush1.msra.mxu0 0.0
          %524 = vmatprep.subr.mxu0 0.0
          %525 = vmatpush1.msra.mxu0 0.0
          %526 = vmatprep.subr.mxu0 0.0
          %527 = vmatpush1.msra.mxu0 0.0
          %528 = vmatprep.subr.mxu0 0.0
          %529 = vmatpush1.msra.mxu0 0.0
          %530 = vmatprep.subr.mxu0 0.0
          %531 = vmatpush1.msra.mxu0 0.0
          %532 = vmatprep.subr.mxu0 0.0
          %533 = vmatpush1.msra.mxu0 0.0
          %534 = vmatprep.subr.mxu0 0.0
          %535 = vmatpush1.msra.mxu0 0.0
          %536 = vmatprep.subr.mxu0 0.0
          %537 = vmatpush1.msra.mxu0 0.0
          %538 = vmatprep.subr.mxu0 0.0
          %539 = vmatpush1.msra.mxu0 0.0
          %540 = vmatprep.subr.mxu0 0.0
          %541 = vmatpush1.msra.mxu0 0.0
          %542 = vmatprep.subr.mxu0 0.0
          %543 = vmatpush1.msra.mxu0 0.0
          %544 = vmatprep.subr.mxu0 0.0
          %545 = vmatpush1.msra.mxu0 0.0
          %546 = vmatprep.subr.mxu0 0.0
          %547 = vmatpush1.msra.mxu0 0.0
          %548 = vmatprep.subr.mxu0 0.0
          %549 = vmatpush1.msra.mxu0 0.0
          %550 = vmatprep.mubr.f32.mxu0 0.0
          %551 = vmatmul.mubr.f32.gmra.mrb[0].mxu0 %v484
          %v552 = vpop.f32.mrb[0].mxu0
          %v553 = vadd.f32 0.0, %v552
          %v554 = vpop.f32.mrb[0].mxu0
          %555 = vdwg.mxu0
          %v556 = vadd.f32 %v476, %v553
          %v557 = vld [vmem:[%s5] sm:$0x1]
          %v559 = vlaneseq
          %v560 = vshrl.u32 %v559, 7
          %v561 = vsub.s32 0, %v560
          %v562 = vrot.slane %v557, %v561
          %v564 = vadd.f32 %v556, %v562
          %v565 = vxor.u32 %v564, 2147483648
          %v566 = vmul.f32 %v565, 1.442695
          %v567 = vpow.pop %v566
          %v568 = vadd.f32 %v567, 1.0
          %v569 = vrcp.pop %v568
          %v570 = vmul.f32 1.0, %v569
          %s571 = scalar_lea.vmem %s2, 32
          %v572 = vld [vmem:[%s571] sm:$0xff]
          %v573 = vld [vmem:[%s571 + $0x8] sm:$0xff]
          %v574 = vld [vmem:[%s571 + $0x10] sm:$0xff]
          %v575 = vld [vmem:[%s571 + $0x18] sm:$0xff]
          %s576 = scalar_lea.vmem %s3, 32
          %v577 = vld [vmem:[%s576] sm:$0xff]
          %v578 = vld [vmem:[%s576 + $0x8] sm:$0xff]
          %v579 = vld [vmem:[%s576 + $0x10] sm:$0xff]
          %v580 = vld [vmem:[%s576 + $0x18] sm:$0xff]
          %581 = vmatprep.subr.mxu0 0.0
          %582 = vmatpush1.msra.mxu0 %v577
          %583 = vmatprep.subr.mxu0 0.0
          %584 = vmatpush1.msra.mxu0 %v578
          %585 = vmatprep.subr.mxu0 0.0
          %586 = vmatpush1.msra.mxu0 %v579
          %587 = vmatprep.subr.mxu0 0.0
          %588 = vmatpush1.msra.mxu0 %v580
          %589 = vmatprep.subr.mxu0 0.0
          %590 = vmatpush1.msra.mxu0 0.0
          %591 = vmatprep.subr.mxu0 0.0
          %592 = vmatpush1.msra.mxu0 0.0
          %593 = vmatprep.subr.mxu0 0.0
          %594 = vmatpush1.msra.mxu0 0.0
          %595 = vmatprep.subr.mxu0 0.0
          %596 = vmatpush1.msra.mxu0 0.0
          %597 = vmatprep.subr.mxu0 0.0
          %598 = vmatpush1.msra.mxu0 0.0
          %599 = vmatprep.subr.mxu0 0.0
          %600 = vmatpush1.msra.mxu0 0.0
          %601 = vmatprep.subr.mxu0 0.0
          %602 = vmatpush1.msra.mxu0 0.0
          %603 = vmatprep.subr.mxu0 0.0
          %604 = vmatpush1.msra.mxu0 0.0
          %605 = vmatprep.subr.mxu0 0.0
          %606 = vmatpush1.msra.mxu0 0.0
          %607 = vmatprep.subr.mxu0 0.0
          %608 = vmatpush1.msra.mxu0 0.0
          %609 = vmatprep.subr.mxu0 0.0
          %610 = vmatpush1.msra.mxu0 0.0
          %611 = vmatprep.subr.mxu0 0.0
          %612 = vmatpush1.msra.mxu0 0.0
          %613 = vmatprep.subr.mxu0 0.0
          %614 = vmatpush1.msra.mxu0 0.0
          %615 = vmatprep.subr.mxu0 0.0
          %616 = vmatpush1.msra.mxu0 0.0
          %617 = vmatprep.subr.mxu0 0.0
          %618 = vmatpush1.msra.mxu0 0.0
          %619 = vmatprep.subr.mxu0 0.0
          %620 = vmatpush1.msra.mxu0 0.0
          %621 = vmatprep.subr.mxu0 0.0
          %622 = vmatpush1.msra.mxu0 0.0
          %623 = vmatprep.subr.mxu0 0.0
          %624 = vmatpush1.msra.mxu0 0.0
          %625 = vmatprep.subr.mxu0 0.0
          %626 = vmatpush1.msra.mxu0 0.0
          %627 = vmatprep.subr.mxu0 0.0
          %628 = vmatpush1.msra.mxu0 0.0
          %629 = vmatprep.subr.mxu0 0.0
          %630 = vmatpush1.msra.mxu0 0.0
          %631 = vmatprep.subr.mxu0 0.0
          %632 = vmatpush1.msra.mxu0 0.0
          %633 = vmatprep.subr.mxu0 0.0
          %634 = vmatpush1.msra.mxu0 0.0
          %635 = vmatprep.subr.mxu0 0.0
          %636 = vmatpush1.msra.mxu0 0.0
          %637 = vmatprep.subr.mxu0 0.0
          %638 = vmatpush1.msra.mxu0 0.0
          %639 = vmatprep.subr.mxu0 0.0
          %640 = vmatpush1.msra.mxu0 0.0
          %641 = vmatprep.subr.mxu0 0.0
          %642 = vmatpush1.msra.mxu0 0.0
          %643 = vmatprep.subr.mxu0 0.0
          %644 = vmatpush1.msra.mxu0 0.0
          %645 = vmatprep.mubr.f32.mxu0 0.0
          %646 = vmatmul.mubr.f32.gmra.mrb[0].mxu0 %v334
          %v647 = vpop.f32.mrb[0].mxu0
          %v648 = vadd.f32 0.0, %v647
          %v649 = vpop.f32.mrb[0].mxu0
          %650 = vdwg.mxu0
          %651 = vmatprep.subr.mxu0 0.0
          %652 = vmatpush1.msra.mxu0 %v572
          %653 = vmatprep.subr.mxu0 0.0
          %654 = vmatpush1.msra.mxu0 %v573
          %655 = vmatprep.subr.mxu0 0.0
          %656 = vmatpush1.msra.mxu0 %v574
          %657 = vmatprep.subr.mxu0 0.0
          %658 = vmatpush1.msra.mxu0 %v575
          %659 = vmatprep.subr.mxu0 0.0
          %660 = vmatpush1.msra.mxu0 0.0
          %661 = vmatprep.subr.mxu0 0.0
          %662 = vmatpush1.msra.mxu0 0.0
          %663 = vmatprep.subr.mxu0 0.0
          %664 = vmatpush1.msra.mxu0 0.0
          %665 = vmatprep.subr.mxu0 0.0
          %666 = vmatpush1.msra.mxu0 0.0
          %667 = vmatprep.subr.mxu0 0.0
          %668 = vmatpush1.msra.mxu0 0.0
          %669 = vmatprep.subr.mxu0 0.0
          %670 = vmatpush1.msra.mxu0 0.0
          %671 = vmatprep.subr.mxu0 0.0
          %672 = vmatpush1.msra.mxu0 0.0
          %673 = vmatprep.subr.mxu0 0.0
          %674 = vmatpush1.msra.mxu0 0.0
          %675 = vmatprep.subr.mxu0 0.0
          %676 = vmatpush1.msra.mxu0 0.0
          %677 = vmatprep.subr.mxu0 0.0
          %678 = vmatpush1.msra.mxu0 0.0
          %679 = vmatprep.subr.mxu0 0.0
          %680 = vmatpush1.msra.mxu0 0.0
          %681 = vmatprep.subr.mxu0 0.0
          %682 = vmatpush1.msra.mxu0 0.0
          %683 = vmatprep.subr.mxu0 0.0
          %684 = vmatpush1.msra.mxu0 0.0
          %685 = vmatprep.subr.mxu0 0.0
          %686 = vmatpush1.msra.mxu0 0.0
          %687 = vmatprep.subr.mxu0 0.0
          %688 = vmatpush1.msra.mxu0 0.0
          %689 = vmatprep.subr.mxu0 0.0
          %690 = vmatpush1.msra.mxu0 0.0
          %691 = vmatprep.subr.mxu0 0.0
          %692 = vmatpush1.msra.mxu0 0.0
          %693 = vmatprep.subr.mxu0 0.0
          %694 = vmatpush1.msra.mxu0 0.0
          %695 = vmatprep.subr.mxu0 0.0
          %696 = vmatpush1.msra.mxu0 0.0
          %697 = vmatprep.subr.mxu0 0.0
          %698 = vmatpush1.msra.mxu0 0.0
          %699 = vmatprep.subr.mxu0 0.0
          %700 = vmatpush1.msra.mxu0 0.0
          %701 = vmatprep.subr.mxu0 0.0
          %702 = vmatpush1.msra.mxu0 0.0
          %703 = vmatprep.subr.mxu0 0.0
          %704 = vmatpush1.msra.mxu0 0.0
          %705 = vmatprep.subr.mxu0 0.0
          %706 = vmatpush1.msra.mxu0 0.0
          %707 = vmatprep.subr.mxu0 0.0
          %708 = vmatpush1.msra.mxu0 0.0
          %709 = vmatprep.subr.mxu0 0.0
          %710 = vmatpush1.msra.mxu0 0.0
          %711 = vmatprep.subr.mxu0 0.0
          %712 = vmatpush1.msra.mxu0 0.0
          %713 = vmatprep.subr.mxu0 0.0
          %714 = vmatpush1.msra.mxu0 0.0
          %715 = vmatprep.mubr.f32.mxu0 0.0
          %716 = vmatmul.mubr.f32.gmra.mrb[0].mxu0 %v407
          %v717 = vpop.f32.mrb[0].mxu0
          %v718 = vadd.f32 %v648, %v717
          %v719 = vpop.f32.mrb[0].mxu0
          %720 = vdwg.mxu0
          %s721 = scalar_lea.vmem [#allocation9], 32
          %v722 = vld [vmem:[%s721] sm:$0xff]
          %v723 = vld [vmem:[%s721 + $0x8] sm:$0xff]
          %v724 = vld [vmem:[%s721 + $0x10] sm:$0xff]
          %v725 = vld [vmem:[%s721 + $0x18] sm:$0xff]
          %726 = vmatprep.subr.mxu0 0.0
          %727 = vmatpush1.msra.mxu0 %v722
          %728 = vmatprep.subr.mxu0 0.0
          %729 = vmatpush1.msra.mxu0 %v723
          %730 = vmatprep.subr.mxu0 0.0
          %731 = vmatpush1.msra.mxu0 %v724
          %732 = vmatprep.subr.mxu0 0.0
          %733 = vmatpush1.msra.mxu0 %v725
          %734 = vmatprep.subr.mxu0 0.0
          %735 = vmatpush1.msra.mxu0 0.0
          %736 = vmatprep.subr.mxu0 0.0
          %737 = vmatpush1.msra.mxu0 0.0
          %738 = vmatprep.subr.mxu0 0.0
          %739 = vmatpush1.msra.mxu0 0.0
          %740 = vmatprep.subr.mxu0 0.0
          %741 = vmatpush1.msra.mxu0 0.0
          %742 = vmatprep.subr.mxu0 0.0
          %743 = vmatpush1.msra.mxu0 0.0
          %744 = vmatprep.subr.mxu0 0.0
          %745 = vmatpush1.msra.mxu0 0.0
          %746 = vmatprep.subr.mxu0 0.0
          %747 = vmatpush1.msra.mxu0 0.0
          %748 = vmatprep.subr.mxu0 0.0
          %749 = vmatpush1.msra.mxu0 0.0
          %750 = vmatprep.subr.mxu0 0.0
          %751 = vmatpush1.msra.mxu0 0.0
          %752 = vmatprep.subr.mxu0 0.0
          %753 = vmatpush1.msra.mxu0 0.0
          %754 = vmatprep.subr.mxu0 0.0
          %755 = vmatpush1.msra.mxu0 0.0
          %756 = vmatprep.subr.mxu0 0.0
          %757 = vmatpush1.msra.mxu0 0.0
          %758 = vmatprep.subr.mxu0 0.0
          %759 = vmatpush1.msra.mxu0 0.0
          %760 = vmatprep.subr.mxu0 0.0
          %761 = vmatpush1.msra.mxu0 0.0
          %762 = vmatprep.subr.mxu0 0.0
          %763 = vmatpush1.msra.mxu0 0.0
          %764 = vmatprep.subr.mxu0 0.0
          %765 = vmatpush1.msra.mxu0 0.0
          %766 = vmatprep.subr.mxu0 0.0
          %767 = vmatpush1.msra.mxu0 0.0
          %768 = vmatprep.subr.mxu0 0.0
          %769 = vmatpush1.msra.mxu0 0.0
          %770 = vmatprep.subr.mxu0 0.0
          %771 = vmatpush1.msra.mxu0 0.0
          %772 = vmatprep.subr.mxu0 0.0
          %773 = vmatpush1.msra.mxu0 0.0
          %774 = vmatprep.subr.mxu0 0.0
          %775 = vmatpush1.msra.mxu0 0.0
          %776 = vmatprep.subr.mxu0 0.0
          %777 = vmatpush1.msra.mxu0 0.0
          %778 = vmatprep.subr.mxu0 0.0
          %779 = vmatpush1.msra.mxu0 0.0
          %780 = vmatprep.subr.mxu0 0.0
          %781 = vmatpush1.msra.mxu0 0.0
          %782 = vmatprep.subr.mxu0 0.0
          %783 = vmatpush1.msra.mxu0 0.0
          %784 = vmatprep.subr.mxu0 0.0
          %785 = vmatpush1.msra.mxu0 0.0
          %786 = vmatprep.subr.mxu0 0.0
          %787 = vmatpush1.msra.mxu0 0.0
          %788 = vmatprep.subr.mxu0 0.0
          %789 = vmatpush1.msra.mxu0 0.0
          %790 = vmatprep.mubr.f32.mxu0 0.0
          %791 = vmatmul.mubr.f32.gmra.mrb[0].mxu0 %v484
          %v792 = vpop.f32.mrb[0].mxu0
          %v793 = vadd.f32 0.0, %v792
          %v794 = vpop.f32.mrb[0].mxu0
          %795 = vdwg.mxu0
          %v796 = vadd.f32 %v718, %v793
          %s797 = scalar_lea.vmem %s5, 1
          %v798 = vld [vmem:[%s797] sm:$0x1]
          %v800 = vlaneseq
          %v801 = vshrl.u32 %v800, 7
          %v802 = vsub.s32 0, %v801
          %v803 = vrot.slane %v798, %v802
          %v805 = vadd.f32 %v796, %v803
          %v806 = vxor.u32 %v805, 2147483648
          %v807 = vmul.f32 %v806, 1.442695
          %v808 = vpow.pop %v807
          %v809 = vadd.f32 %v808, 1.0
          %v810 = vrcp.pop %v809
          %v811 = vmul.f32 1.0, %v810
          %s812 = scalar_lea.vmem %s2, 64
          %v813 = vld [vmem:[%s812] sm:$0xff]
          %v814 = vld [vmem:[%s812 + $0x8] sm:$0xff]
          %v815 = vld [vmem:[%s812 + $0x10] sm:$0xff]
          %v816 = vld [vmem:[%s812 + $0x18] sm:$0xff]
          %s817 = scalar_lea.vmem %s3, 64
          %v818 = vld [vmem:[%s817] sm:$0xff]
          %v819 = vld [vmem:[%s817 + $0x8] sm:$0xff]
          %v820 = vld [vmem:[%s817 + $0x10] sm:$0xff]
          %v821 = vld [vmem:[%s817 + $0x18] sm:$0xff]
          %822 = vmatprep.subr.mxu0 0.0
          %823 = vmatpush1.msra.mxu0 %v818
          %824 = vmatprep.subr.mxu0 0.0
          %825 = vmatpush1.msra.mxu0 %v819
          %826 = vmatprep.subr.mxu0 0.0
          %827 = vmatpush1.msra.mxu0 %v820
          %828 = vmatprep.subr.mxu0 0.0
          %829 = vmatpush1.msra.mxu0 %v821
          %830 = vmatprep.subr.mxu0 0.0
          %831 = vmatpush1.msra.mxu0 0.0
          %832 = vmatprep.subr.mxu0 0.0
          %833 = vmatpush1.msra.mxu0 0.0
          %834 = vmatprep.subr.mxu0 0.0
          %835 = vmatpush1.msra.mxu0 0.0
          %836 = vmatprep.subr.mxu0 0.0
          %837 = vmatpush1.msra.mxu0 0.0
          %838 = vmatprep.subr.mxu0 0.0
          %839 = vmatpush1.msra.mxu0 0.0
          %840 = vmatprep.subr.mxu0 0.0
          %841 = vmatpush1.msra.mxu0 0.0
          %842 = vmatprep.subr.mxu0 0.0
          %843 = vmatpush1.msra.mxu0 0.0
          %844 = vmatprep.subr.mxu0 0.0
          %845 = vmatpush1.msra.mxu0 0.0
          %846 = vmatprep.subr.mxu0 0.0
          %847 = vmatpush1.msra.mxu0 0.0
          %848 = vmatprep.subr.mxu0 0.0
          %849 = vmatpush1.msra.mxu0 0.0
          %850 = vmatprep.subr.mxu0 0.0
          %851 = vmatpush1.msra.mxu0 0.0
          %852 = vmatprep.subr.mxu0 0.0
          %853 = vmatpush1.msra.mxu0 0.0
          %854 = vmatprep.subr.mxu0 0.0
          %855 = vmatpush1.msra.mxu0 0.0
          %856 = vmatprep.subr.mxu0 0.0
          %857 = vmatpush1.msra.mxu0 0.0
          %858 = vmatprep.subr.mxu0 0.0
          %859 = vmatpush1.msra.mxu0 0.0
          %860 = vmatprep.subr.mxu0 0.0
          %861 = vmatpush1.msra.mxu0 0.0
          %862 = vmatprep.subr.mxu0 0.0
          %863 = vmatpush1.msra.mxu0 0.0
          %864 = vmatprep.subr.mxu0 0.0
          %865 = vmatpush1.msra.mxu0 0.0
          %866 = vmatprep.subr.mxu0 0.0
          %867 = vmatpush1.msra.mxu0 0.0
          %868 = vmatprep.subr.mxu0 0.0
          %869 = vmatpush1.msra.mxu0 0.0
          %870 = vmatprep.subr.mxu0 0.0
          %871 = vmatpush1.msra.mxu0 0.0
          %872 = vmatprep.subr.mxu0 0.0
          %873 = vmatpush1.msra.mxu0 0.0
          %874 = vmatprep.subr.mxu0 0.0
          %875 = vmatpush1.msra.mxu0 0.0
          %876 = vmatprep.subr.mxu0 0.0
          %877 = vmatpush1.msra.mxu0 0.0
          %878 = vmatprep.subr.mxu0 0.0
          %879 = vmatpush1.msra.mxu0 0.0
          %880 = vmatprep.subr.mxu0 0.0
          %881 = vmatpush1.msra.mxu0 0.0
          %882 = vmatprep.subr.mxu0 0.0
          %883 = vmatpush1.msra.mxu0 0.0
          %884 = vmatprep.subr.mxu0 0.0
          %885 = vmatpush1.msra.mxu0 0.0
          %886 = vmatprep.mubr.f32.mxu0 0.0
          %887 = vmatmul.mubr.f32.gmra.mrb[0].mxu0 %v334
          %v888 = vpop.f32.mrb[0].mxu0
          %v889 = vadd.f32 0.0, %v888
          %v890 = vpop.f32.mrb[0].mxu0
          %891 = vdwg.mxu0
          %892 = vmatprep.subr.mxu0 0.0
          %893 = vmatpush1.msra.mxu0 %v813
          %894 = vmatprep.subr.mxu0 0.0
          %895 = vmatpush1.msra.mxu0 %v814
          %896 = vmatprep.subr.mxu0 0.0
          %897 = vmatpush1.msra.mxu0 %v815
          %898 = vmatprep.subr.mxu0 0.0
          %899 = vmatpush1.msra.mxu0 %v816
          %900 = vmatprep.subr.mxu0 0.0
          %901 = vmatpush1.msra.mxu0 0.0
          %902 = vmatprep.subr.mxu0 0.0
          %903 = vmatpush1.msra.mxu0 0.0
          %904 = vmatprep.subr.mxu0 0.0
          %905 = vmatpush1.msra.mxu0 0.0
          %906 = vmatprep.subr.mxu0 0.0
          %907 = vmatpush1.msra.mxu0 0.0
          %908 = vmatprep.subr.mxu0 0.0
          %909 = vmatpush1.msra.mxu0 0.0
          %910 = vmatprep.subr.mxu0 0.0
          %911 = vmatpush1.msra.mxu0 0.0
          %912 = vmatprep.subr.mxu0 0.0
          %913 = vmatpush1.msra.mxu0 0.0
          %914 = vmatprep.subr.mxu0 0.0
          %915 = vmatpush1.msra.mxu0 0.0
          %916 = vmatprep.subr.mxu0 0.0
          %917 = vmatpush1.msra.mxu0 0.0
          %918 = vmatprep.subr.mxu0 0.0
          %919 = vmatpush1.msra.mxu0 0.0
          %920 = vmatprep.subr.mxu0 0.0
          %921 = vmatpush1.msra.mxu0 0.0
          %922 = vmatprep.subr.mxu0 0.0
          %923 = vmatpush1.msra.mxu0 0.0
          %924 = vmatprep.subr.mxu0 0.0
          %925 = vmatpush1.msra.mxu0 0.0
          %926 = vmatprep.subr.mxu0 0.0
          %927 = vmatpush1.msra.mxu0 0.0
          %928 = vmatprep.subr.mxu0 0.0
          %929 = vmatpush1.msra.mxu0 0.0
          %930 = vmatprep.subr.mxu0 0.0
          %931 = vmatpush1.msra.mxu0 0.0
          %932 = vmatprep.subr.mxu0 0.0
          %933 = vmatpush1.msra.mxu0 0.0
          %934 = vmatprep.subr.mxu0 0.0
          %935 = vmatpush1.msra.mxu0 0.0
          %936 = vmatprep.subr.mxu0 0.0
          %937 = vmatpush1.msra.mxu0 0.0
          %938 = vmatprep.subr.mxu0 0.0
          %939 = vmatpush1.msra.mxu0 0.0
          %940 = vmatprep.subr.mxu0 0.0
          %941 = vmatpush1.msra.mxu0 0.0
          %942 = vmatprep.subr.mxu0 0.0
          %943 = vmatpush1.msra.mxu0 0.0
          %944 = vmatprep.subr.mxu0 0.0
          %945 = vmatpush1.msra.mxu0 0.0
          %946 = vmatprep.subr.mxu0 0.0
          %947 = vmatpush1.msra.mxu0 0.0
          %948 = vmatprep.subr.mxu0 0.0
          %949 = vmatpush1.msra.mxu0 0.0
          %950 = vmatprep.subr.mxu0 0.0
          %951 = vmatpush1.msra.mxu0 0.0
          %952 = vmatprep.subr.mxu0 0.0
          %953 = vmatpush1.msra.mxu0 0.0
          %954 = vmatprep.subr.mxu0 0.0
          %955 = vmatpush1.msra.mxu0 0.0
          %956 = vmatprep.mubr.f32.mxu0 0.0
          %957 = vmatmul.mubr.f32.gmra.mrb[0].mxu0 %v407
          %v958 = vpop.f32.mrb[0].mxu0
          %v959 = vadd.f32 %v889, %v958
          %v960 = vpop.f32.mrb[0].mxu0
          %961 = vdwg.mxu0
          %s962 = scalar_lea.vmem [#allocation9], 64
          %v963 = vld [vmem:[%s962] sm:$0xff]
          %v964 = vld [vmem:[%s962 + $0x8] sm:$0xff]
          %v965 = vld [vmem:[%s962 + $0x10] sm:$0xff]
          %v966 = vld [vmem:[%s962 + $0x18] sm:$0xff]
          %967 = vmatprep.subr.mxu0 0.0
          %968 = vmatpush1.msra.mxu0 %v963
          %969 = vmatprep.subr.mxu0 0.0
          %970 = vmatpush1.msra.mxu0 %v964
          %971 = vmatprep.subr.mxu0 0.0
          %972 = vmatpush1.msra.mxu0 %v965
          %973 = vmatprep.subr.mxu0 0.0
          %974 = vmatpush1.msra.mxu0 %v966
          %975 = vmatprep.subr.mxu0 0.0
          %976 = vmatpush1.msra.mxu0 0.0
          %977 = vmatprep.subr.mxu0 0.0
          %978 = vmatpush1.msra.mxu0 0.0
          %979 = vmatprep.subr.mxu0 0.0
          %980 = vmatpush1.msra.mxu0 0.0
          %981 = vmatprep.subr.mxu0 0.0
          %982 = vmatpush1.msra.mxu0 0.0
          %983 = vmatprep.subr.mxu0 0.0
          %984 = vmatpush1.msra.mxu0 0.0
          %985 = vmatprep.subr.mxu0 0.0
          %986 = vmatpush1.msra.mxu0 0.0
          %987 = vmatprep.subr.mxu0 0.0
          %988 = vmatpush1.msra.mxu0 0.0
          %989 = vmatprep.subr.mxu0 0.0
          %990 = vmatpush1.msra.mxu0 0.0
          %991 = vmatprep.subr.mxu0 0.0
          %992 = vmatpush1.msra.mxu0 0.0
          %993 = vmatprep.subr.mxu0 0.0
          %994 = vmatpush1.msra.mxu0 0.0
          %995 = vmatprep.subr.mxu0 0.0
          %996 = vmatpush1.msra.mxu0 0.0
          %997 = vmatprep.subr.mxu0 0.0
          %998 = vmatpush1.msra.mxu0 0.0
          %999 = vmatprep.subr.mxu0 0.0
          %1000 = vmatpush1.msra.mxu0 0.0
          %1001 = vmatprep.subr.mxu0 0.0
          %1002 = vmatpush1.msra.mxu0 0.0
          %1003 = vmatprep.subr.mxu0 0.0
          %1004 = vmatpush1.msra.mxu0 0.0
          %1005 = vmatprep.subr.mxu0 0.0
          %1006 = vmatpush1.msra.mxu0 0.0
          %1007 = vmatprep.subr.mxu0 0.0
          %1008 = vmatpush1.msra.mxu0 0.0
          %1009 = vmatprep.subr.mxu0 0.0
          %1010 = vmatpush1.msra.mxu0 0.0
          %1011 = vmatprep.subr.mxu0 0.0
          %1012 = vmatpush1.msra.mxu0 0.0
          %1013 = vmatprep.subr.mxu0 0.0
          %1014 = vmatpush1.msra.mxu0 0.0
          %1015 = vmatprep.subr.mxu0 0.0
          %1016 = vmatpush1.msra.mxu0 0.0
          %1017 = vmatprep.subr.mxu0 0.0
          %1018 = vmatpush1.msra.mxu0 0.0
          %1019 = vmatprep.subr.mxu0 0.0
          %1020 = vmatpush1.msra.mxu0 0.0
          %1021 = vmatprep.subr.mxu0 0.0
          %1022 = vmatpush1.msra.mxu0 0.0
          %1023 = vmatprep.subr.mxu0 0.0
          %1024 = vmatpush1.msra.mxu0 0.0
          %1025 = vmatprep.subr.mxu0 0.0
          %1026 = vmatpush1.msra.mxu0 0.0
          %1027 = vmatprep.subr.mxu0 0.0
          %1028 = vmatpush1.msra.mxu0 0.0
          %1029 = vmatprep.subr.mxu0 0.0
          %1030 = vmatpush1.msra.mxu0 0.0
          %1031 = vmatprep.mubr.f32.mxu0 0.0
          %1032 = vmatmul.mubr.f32.gmra.mrb[0].mxu0 %v484
          %v1033 = vpop.f32.mrb[0].mxu0
          %v1034 = vadd.f32 0.0, %v1033
          %v1035 = vpop.f32.mrb[0].mxu0
          %1036 = vdwg.mxu0
          %v1037 = vadd.f32 %v959, %v1034
          %s1038 = scalar_lea.vmem %s5, 2
          %v1039 = vld [vmem:[%s1038] sm:$0x1]
          %v1041 = vlaneseq
          %v1042 = vshrl.u32 %v1041, 7
          %v1043 = vsub.s32 0, %v1042
          %v1044 = vrot.slane %v1039, %v1043
          %v1046 = vadd.f32 %v1037, %v1044
          %v1047 = vtanh.pop %v1046
          %s1048 = scalar_lea.vmem %s2, 96
          %v1049 = vld [vmem:[%s1048] sm:$0xff]
          %v1050 = vld [vmem:[%s1048 + $0x8] sm:$0xff]
          %v1051 = vld [vmem:[%s1048 + $0x10] sm:$0xff]
          %v1052 = vld [vmem:[%s1048 + $0x18] sm:$0xff]
          %s1053 = scalar_lea.vmem %s3, 96
          %v1054 = vld [vmem:[%s1053] sm:$0xff]
          %v1055 = vld [vmem:[%s1053 + $0x8] sm:$0xff]
          %v1056 = vld [vmem:[%s1053 + $0x10] sm:$0xff]
          %v1057 = vld [vmem:[%s1053 + $0x18] sm:$0xff]
          %1058 = vmatprep.subr.mxu0 0.0
          %1059 = vmatpush1.msra.mxu0 %v1054
          %1060 = vmatprep.subr.mxu0 0.0
          %1061 = vmatpush1.msra.mxu0 %v1055
          %1062 = vmatprep.subr.mxu0 0.0
          %1063 = vmatpush1.msra.mxu0 %v1056
          %1064 = vmatprep.subr.mxu0 0.0
          %1065 = vmatpush1.msra.mxu0 %v1057
          %1066 = vmatprep.subr.mxu0 0.0
          %1067 = vmatpush1.msra.mxu0 0.0
          %1068 = vmatprep.subr.mxu0 0.0
          %1069 = vmatpush1.msra.mxu0 0.0
          %1070 = vmatprep.subr.mxu0 0.0
          %1071 = vmatpush1.msra.mxu0 0.0
          %1072 = vmatprep.subr.mxu0 0.0
          %1073 = vmatpush1.msra.mxu0 0.0
          %1074 = vmatprep.subr.mxu0 0.0
          %1075 = vmatpush1.msra.mxu0 0.0
          %1076 = vmatprep.subr.mxu0 0.0
          %1077 = vmatpush1.msra.mxu0 0.0
          %1078 = vmatprep.subr.mxu0 0.0
          %1079 = vmatpush1.msra.mxu0 0.0
          %1080 = vmatprep.subr.mxu0 0.0
          %1081 = vmatpush1.msra.mxu0 0.0
          %1082 = vmatprep.subr.mxu0 0.0
          %1083 = vmatpush1.msra.mxu0 0.0
          %1084 = vmatprep.subr.mxu0 0.0
          %1085 = vmatpush1.msra.mxu0 0.0
          %1086 = vmatprep.subr.mxu0 0.0
          %1087 = vmatpush1.msra.mxu0 0.0
          %1088 = vmatprep.subr.mxu0 0.0
          %1089 = vmatpush1.msra.mxu0 0.0
          %1090 = vmatprep.subr.mxu0 0.0
          %1091 = vmatpush1.msra.mxu0 0.0
          %1092 = vmatprep.subr.mxu0 0.0
          %1093 = vmatpush1.msra.mxu0 0.0
          %1094 = vmatprep.subr.mxu0 0.0
          %1095 = vmatpush1.msra.mxu0 0.0
          %1096 = vmatprep.subr.mxu0 0.0
          %1097 = vmatpush1.msra.mxu0 0.0
          %1098 = vmatprep.subr.mxu0 0.0
          %1099 = vmatpush1.msra.mxu0 0.0
          %1100 = vmatprep.subr.mxu0 0.0
          %1101 = vmatpush1.msra.mxu0 0.0
          %1102 = vmatprep.subr.mxu0 0.0
          %1103 = vmatpush1.msra.mxu0 0.0
          %1104 = vmatprep.subr.mxu0 0.0
          %1105 = vmatpush1.msra.mxu0 0.0
          %1106 = vmatprep.subr.mxu0 0.0
          %1107 = vmatpush1.msra.mxu0 0.0
          %1108 = vmatprep.subr.mxu0 0.0
          %1109 = vmatpush1.msra.mxu0 0.0
          %1110 = vmatprep.subr.mxu0 0.0
          %1111 = vmatpush1.msra.mxu0 0.0
          %1112 = vmatprep.subr.mxu0 0.0
          %1113 = vmatpush1.msra.mxu0 0.0
          %1114 = vmatprep.subr.mxu0 0.0
          %1115 = vmatpush1.msra.mxu0 0.0
          %1116 = vmatprep.subr.mxu0 0.0
          %1117 = vmatpush1.msra.mxu0 0.0
          %1118 = vmatprep.subr.mxu0 0.0
          %1119 = vmatpush1.msra.mxu0 0.0
          %1120 = vmatprep.subr.mxu0 0.0
          %1121 = vmatpush1.msra.mxu0 0.0
          %1122 = vmatprep.mubr.f32.mxu0 0.0
          %1123 = vmatmul.mubr.f32.gmra.mrb[0].mxu0 %v334
          %v1124 = vpop.f32.mrb[0].mxu0
          %v1125 = vadd.f32 0.0, %v1124
          %v1126 = vpop.f32.mrb[0].mxu0
          %1127 = vdwg.mxu0
          %1128 = vmatprep.subr.mxu0 0.0
          %1129 = vmatpush1.msra.mxu0 %v1049
          %1130 = vmatprep.subr.mxu0 0.0
          %1131 = vmatpush1.msra.mxu0 %v1050
          %1132 = vmatprep.subr.mxu0 0.0
          %1133 = vmatpush1.msra.mxu0 %v1051
          %1134 = vmatprep.subr.mxu0 0.0
          %1135 = vmatpush1.msra.mxu0 %v1052
          %1136 = vmatprep.subr.mxu0 0.0
          %1137 = vmatpush1.msra.mxu0 0.0
          %1138 = vmatprep.subr.mxu0 0.0
          %1139 = vmatpush1.msra.mxu0 0.0
          %1140 = vmatprep.subr.mxu0 0.0
          %1141 = vmatpush1.msra.mxu0 0.0
          %1142 = vmatprep.subr.mxu0 0.0
          %1143 = vmatpush1.msra.mxu0 0.0
          %1144 = vmatprep.subr.mxu0 0.0
          %1145 = vmatpush1.msra.mxu0 0.0
          %1146 = vmatprep.subr.mxu0 0.0
          %1147 = vmatpush1.msra.mxu0 0.0
          %1148 = vmatprep.subr.mxu0 0.0
          %1149 = vmatpush1.msra.mxu0 0.0
          %1150 = vmatprep.subr.mxu0 0.0
          %1151 = vmatpush1.msra.mxu0 0.0
          %1152 = vmatprep.subr.mxu0 0.0
          %1153 = vmatpush1.msra.mxu0 0.0
          %1154 = vmatprep.subr.mxu0 0.0
          %1155 = vmatpush1.msra.mxu0 0.0
          %1156 = vmatprep.subr.mxu0 0.0
          %1157 = vmatpush1.msra.mxu0 0.0
          %1158 = vmatprep.subr.mxu0 0.0
          %1159 = vmatpush1.msra.mxu0 0.0
          %1160 = vmatprep.subr.mxu0 0.0
          %1161 = vmatpush1.msra.mxu0 0.0
          %1162 = vmatprep.subr.mxu0 0.0
          %1163 = vmatpush1.msra.mxu0 0.0
          %1164 = vmatprep.subr.mxu0 0.0
          %1165 = vmatpush1.msra.mxu0 0.0
          %1166 = vmatprep.subr.mxu0 0.0
          %1167 = vmatpush1.msra.mxu0 0.0
          %1168 = vmatprep.subr.mxu0 0.0
          %1169 = vmatpush1.msra.mxu0 0.0
          %1170 = vmatprep.subr.mxu0 0.0
          %1171 = vmatpush1.msra.mxu0 0.0
          %1172 = vmatprep.subr.mxu0 0.0
          %1173 = vmatpush1.msra.mxu0 0.0
          %1174 = vmatprep.subr.mxu0 0.0
          %1175 = vmatpush1.msra.mxu0 0.0
          %1176 = vmatprep.subr.mxu0 0.0
          %1177 = vmatpush1.msra.mxu0 0.0
          %1178 = vmatprep.subr.mxu0 0.0
          %1179 = vmatpush1.msra.mxu0 0.0
          %1180 = vmatprep.subr.mxu0 0.0
          %1181 = vmatpush1.msra.mxu0 0.0
          %1182 = vmatprep.subr.mxu0 0.0
          %1183 = vmatpush1.msra.mxu0 0.0
          %1184 = vmatprep.subr.mxu0 0.0
          %1185 = vmatpush1.msra.mxu0 0.0
          %1186 = vmatprep.subr.mxu0 0.0
          %1187 = vmatpush1.msra.mxu0 0.0
          %1188 = vmatprep.subr.mxu0 0.0
          %1189 = vmatpush1.msra.mxu0 0.0
          %1190 = vmatprep.subr.mxu0 0.0
          %1191 = vmatpush1.msra.mxu0 0.0
          %1192 = vmatprep.mubr.f32.mxu0 0.0
          %1193 = vmatmul.mubr.f32.gmra.mrb[0].mxu0 %v407
          %v1194 = vpop.f32.mrb[0].mxu0
          %v1195 = vadd.f32 %v1125, %v1194
          %v1196 = vpop.f32.mrb[0].mxu0
          %1197 = vdwg.mxu0
          %s1198 = scalar_lea.vmem [#allocation9], 96
          %v1199 = vld [vmem:[%s1198] sm:$0xff]
          %v1200 = vld [vmem:[%s1198 + $0x8] sm:$0xff]
          %v1201 = vld [vmem:[%s1198 + $0x10] sm:$0xff]
          %v1202 = vld [vmem:[%s1198 + $0x18] sm:$0xff]
          %1203 = vmatprep.subr.mxu0 0.0
          %1204 = vmatpush1.msra.mxu0 %v1199
          %1205 = vmatprep.subr.mxu0 0.0
          %1206 = vmatpush1.msra.mxu0 %v1200
          %1207 = vmatprep.subr.mxu0 0.0
          %1208 = vmatpush1.msra.mxu0 %v1201
          %1209 = vmatprep.subr.mxu0 0.0
          %1210 = vmatpush1.msra.mxu0 %v1202
          %1211 = vmatprep.subr.mxu0 0.0
          %1212 = vmatpush1.msra.mxu0 0.0
          %1213 = vmatprep.subr.mxu0 0.0
          %1214 = vmatpush1.msra.mxu0 0.0
          %1215 = vmatprep.subr.mxu0 0.0
          %1216 = vmatpush1.msra.mxu0 0.0
          %1217 = vmatprep.subr.mxu0 0.0
          %1218 = vmatpush1.msra.mxu0 0.0
          %1219 = vmatprep.subr.mxu0 0.0
          %1220 = vmatpush1.msra.mxu0 0.0
          %1221 = vmatprep.subr.mxu0 0.0
          %1222 = vmatpush1.msra.mxu0 0.0
          %1223 = vmatprep.subr.mxu0 0.0
          %1224 = vmatpush1.msra.mxu0 0.0
          %1225 = vmatprep.subr.mxu0 0.0
          %1226 = vmatpush1.msra.mxu0 0.0
          %1227 = vmatprep.subr.mxu0 0.0
          %1228 = vmatpush1.msra.mxu0 0.0
          %1229 = vmatprep.subr.mxu0 0.0
          %1230 = vmatpush1.msra.mxu0 0.0
          %1231 = vmatprep.subr.mxu0 0.0
          %1232 = vmatpush1.msra.mxu0 0.0
          %1233 = vmatprep.subr.mxu0 0.0
          %1234 = vmatpush1.msra.mxu0 0.0
          %1235 = vmatprep.subr.mxu0 0.0
          %1236 = vmatpush1.msra.mxu0 0.0
          %1237 = vmatprep.subr.mxu0 0.0
          %1238 = vmatpush1.msra.mxu0 0.0
          %1239 = vmatprep.subr.mxu0 0.0
          %1240 = vmatpush1.msra.mxu0 0.0
          %1241 = vmatprep.subr.mxu0 0.0
          %1242 = vmatpush1.msra.mxu0 0.0
          %1243 = vmatprep.subr.mxu0 0.0
          %1244 = vmatpush1.msra.mxu0 0.0
          %1245 = vmatprep.subr.mxu0 0.0
          %1246 = vmatpush1.msra.mxu0 0.0
          %1247 = vmatprep.subr.mxu0 0.0
          %1248 = vmatpush1.msra.mxu0 0.0
          %1249 = vmatprep.subr.mxu0 0.0
          %1250 = vmatpush1.msra.mxu0 0.0
          %1251 = vmatprep.subr.mxu0 0.0
          %1252 = vmatpush1.msra.mxu0 0.0
          %1253 = vmatprep.subr.mxu0 0.0
          %1254 = vmatpush1.msra.mxu0 0.0
          %1255 = vmatprep.subr.mxu0 0.0
          %1256 = vmatpush1.msra.mxu0 0.0
          %1257 = vmatprep.subr.mxu0 0.0
          %1258 = vmatpush1.msra.mxu0 0.0
          %1259 = vmatprep.subr.mxu0 0.0
          %1260 = vmatpush1.msra.mxu0 0.0
          %1261 = vmatprep.subr.mxu0 0.0
          %1262 = vmatpush1.msra.mxu0 0.0
          %1263 = vmatprep.subr.mxu0 0.0
          %1264 = vmatpush1.msra.mxu0 0.0
          %1265 = vmatprep.subr.mxu0 0.0
          %1266 = vmatpush1.msra.mxu0 0.0
          %1267 = vmatprep.mubr.f32.mxu0 0.0
          %1268 = vmatmul.mubr.f32.gmra.mrb[0].mxu0 %v484
          %v1269 = vpop.f32.mrb[0].mxu0
          %v1270 = vadd.f32 0.0, %v1269
          %v1271 = vpop.f32.mrb[0].mxu0
          %1272 = vdwg.mxu0
          %v1273 = vadd.f32 %v1195, %v1270
          %s1274 = scalar_lea.vmem %s5, 3
          %v1275 = vld [vmem:[%s1274] sm:$0x1]
          %v1277 = vlaneseq
          %v1278 = vshrl.u32 %v1277, 7
          %v1279 = vsub.s32 0, %v1278
          %v1280 = vrot.slane %v1275, %v1279
          %v1282 = vadd.f32 %v1273, %v1280
          %v1283 = vxor.u32 %v1282, 2147483648
          %v1284 = vmul.f32 %v1283, 1.442695
          %v1285 = vpow.pop %v1284
          %v1286 = vadd.f32 %v1285, 1.0
          %v1287 = vrcp.pop %v1286
          %v1288 = vmul.f32 1.0, %v1287
          %v1289 = vmul.f32 %v811, %v323
          %v1290 = vmul.f32 %v570, %v1047
          %v1291 = vadd.f32 %v1289, %v1290
          %v1292 = vtanh.pop %v1291
          %v1293 = vmul.f32 %v1288, %v1292
          %vm1294 = vcmask 256000
          %1295 = vst.msk [vmem:[#allocation3] sm:$0x7] %vm1294, %v1291
          %1296 = vst.msk [vmem:[#allocation2] sm:$0x7] %vm1294, %v1293
          %1297 = vst.msk [vmem:[#allocation4] sm:$0x7] %vm1294, %v1293
          %vm1298 = vcmask 2048
          %1299 = vst.msk [vmem:[#allocation6] sm:$0x7] %vm1298, -1e+30
          %1300 = vst.msk [vmem:[#allocation7] sm:$0x7] %vm1298, 0.0
          %1301 = vst.msk [vmem:[#allocation8] sm:$0x7] %vm1294, 0.0
        $region52: #{tpu_custom_call.1} parent=43 // pred_fallthru
          _
        %v1302 = vld [vmem:[#allocation4] sm:$0x7]
        %v1303 = vld [vmem:[%s302] sm:$0xff]
        %v1304 = vld [vmem:[%s302 + $0x8] sm:$0xff]
        %v1305 = vld [vmem:[%s302 + $0x10] sm:$0xff]
        %v1306 = vld [vmem:[%s302 + $0x18] sm:$0xff]
        %v1307 = vld [vmem:[%s302 + $0x20] sm:$0xff]
        %v1308 = vld [vmem:[%s302 + $0x28] sm:$0xff]
        %v1309 = vld [vmem:[%s302 + $0x30] sm:$0xff]
        %v1310 = vld [vmem:[%s302 + $0x38] sm:$0xff]
        %v1311 = vld [vmem:[%s302 + $0x40] sm:$0xff]
        %v1312 = vld [vmem:[%s302 + $0x48] sm:$0xff]
        %v1313 = vld [vmem:[%s302 + $0x50] sm:$0xff]
        %v1314 = vld [vmem:[%s302 + $0x58] sm:$0xff]
        %v1315 = vld [vmem:[%s302 + $0x60] sm:$0xff]
        %v1316 = vld [vmem:[%s302 + $0x68] sm:$0xff]
        %v1317 = vld [vmem:[%s302 + $0x70] sm:$0xff]
        %v1318 = vld [vmem:[%s302 + $0x78] sm:$0xff]
        %v1319 = vld [vmem:[%s306] sm:$0x1]
        %v1320 = vlaneseq
        %v1321 = vshrl.u32 %v1320, 7
        %v1322 = vlaneseq
        %v1323 = vshrl.u32 %v1322, 7
        %v1324 = vsub.s32 0, %v1323
        %v1325 = vrot.slane %v1319, %v1324
        %vm1326 = vcmp.eq.s32.totalorder %v1325, %v1321
        %vm1327 = vcmask 261120
        %v1329 = vsel %vm1327, %v1302, 0
        %v1332 = vsel %vm1327, %v1303, 0
        %v1335 = vsel %vm1327, %v1304, 0
        %v1338 = vsel %vm1327, %v1305, 0
        %v1341 = vsel %vm1327, %v1306, 0
        %v1344 = vsel %vm1327, %v1307, 0
        %v1347 = vsel %vm1327, %v1308, 0
        %v1350 = vsel %vm1327, %v1309, 0
        %v1353 = vsel %vm1327, %v1310, 0
        %v1356 = vsel %vm1327, %v1311, 0
        %v1359 = vsel %vm1327, %v1312, 0
        %v1362 = vsel %vm1327, %v1313, 0
        %v1365 = vsel %vm1327, %v1314, 0
        %v1368 = vsel %vm1327, %v1315, 0
        %v1371 = vsel %vm1327, %v1316, 0
        %v1374 = vsel %vm1327, %v1317, 0
        %v1377 = vsel %vm1327, %v1318, 0
        %1379 = vmatprep.subr.mxu0 0.0
        %1380 = vmatpush1.xpose.msra.mxu0 %v1332
        %1381 = vmatprep.subr.mxu0 0.0
        %1382 = vmatpush1.xpose.msra.mxu0 %v1335
        %1383 = vmatprep.subr.mxu0 0.0
        %1384 = vmatpush1.xpose.msra.mxu0 %v1338
        %1385 = vmatprep.subr.mxu0 0.0
        %1386 = vmatpush1.xpose.msra.mxu0 %v1341
        %1387 = vmatprep.subr.mxu0 0.0
        %1388 = vmatpush1.xpose.msra.mxu0 %v1344
        %1389 = vmatprep.subr.mxu0 0.0
        %1390 = vmatpush1.xpose.msra.mxu0 %v1347
        %1391 = vmatprep.subr.mxu0 0.0
        %1392 = vmatpush1.xpose.msra.mxu0 %v1350
        %1393 = vmatprep.subr.mxu0 0.0
        %1394 = vmatpush1.xpose.msra.mxu0 %v1353
        %1395 = vmatprep.subr.mxu0 0.0
        %1396 = vmatpush1.xpose.msra.mxu0 %v1356
        %1397 = vmatprep.subr.mxu0 0.0
        %1398 = vmatpush1.xpose.msra.mxu0 %v1359
        %1399 = vmatprep.subr.mxu0 0.0
        %1400 = vmatpush1.xpose.msra.mxu0 %v1362
        %1401 = vmatprep.subr.mxu0 0.0
        %1402 = vmatpush1.xpose.msra.mxu0 %v1365
        %1403 = vmatprep.subr.mxu0 0.0
        %1404 = vmatpush1.xpose.msra.mxu0 %v1368
        %1405 = vmatprep.subr.mxu0 0.0
        %1406 = vmatpush1.xpose.msra.mxu0 %v1371
        %1407 = vmatprep.subr.mxu0 0.0
        %1408 = vmatpush1.xpose.msra.mxu0 %v1374
        %1409 = vmatprep.subr.mxu0 0.0
        %1410 = vmatpush1.xpose.msra.mxu0 %v1377
        %1411 = vmatprep.subr.mxu0 0.0
        %1412 = vmatpush1.xpose.msra.mxu0 0.0
        %1413 = vmatprep.subr.mxu0 0.0
        %1414 = vmatpush1.xpose.msra.mxu0 0.0
        %1415 = vmatprep.subr.mxu0 0.0
        %1416 = vmatpush1.xpose.msra.mxu0 0.0
        %1417 = vmatprep.subr.mxu0 0.0
        %1418 = vmatpush1.xpose.msra.mxu0 0.0
        %1419 = vmatprep.subr.mxu0 0.0
        %1420 = vmatpush1.xpose.msra.mxu0 0.0
        %1421 = vmatprep.subr.mxu0 0.0
        %1422 = vmatpush1.xpose.msra.mxu0 0.0
        %1423 = vmatprep.subr.mxu0 0.0
        %1424 = vmatpush1.xpose.msra.mxu0 0.0
        %1425 = vmatprep.subr.mxu0 0.0
        %1426 = vmatpush1.xpose.msra.mxu0 0.0
        %1427 = vmatprep.subr.mxu0 0.0
        %1428 = vmatpush1.xpose.msra.mxu0 0.0
        %1429 = vmatprep.subr.mxu0 0.0
        %1430 = vmatpush1.xpose.msra.mxu0 0.0
        %1431 = vmatprep.subr.mxu0 0.0
        %1432 = vmatpush1.xpose.msra.mxu0 0.0
        %1433 = vmatprep.subr.mxu0 0.0
        %1434 = vmatpush1.xpose.msra.mxu0 0.0
        %1435 = vmatprep.subr.mxu0 0.0
        %1436 = vmatpush1.xpose.msra.mxu0 0.0
        %1437 = vmatprep.subr.mxu0 0.0
        %1438 = vmatpush1.xpose.msra.mxu0 0.0
        %1439 = vmatprep.subr.mxu0 0.0
        %1440 = vmatpush1.xpose.msra.mxu0 0.0
        %1441 = vmatprep.subr.mxu0 0.0
        %1442 = vmatpush1.xpose.msra.mxu0 0.0
        %1443 = vmatprep.mubr.f32.mxu0 0.0
        %1444 = vmatmul.mubr.f32.gmra.mrb[0].mxu0 %v1329
        %v1445 = vpop.f32.mrb[0].mxu0
        %v1446 = vadd.f32 0.0, %v1445
        %v1447 = vpop.f32.mrb[0].mxu0
        %1448 = vdwg.mxu0
        %v1449 = vsel %vm1326, %v1446, -1e+30
        %v1450 = vld [vmem:[#allocation6] sm:$0x7]
        %vm1451 = vcmask 1042432
        %v1452 = vsel %vm1451, %v1449, -inf
        %1453 = vmax.xlane.f32.xlu0 %v1452
        %v1454 = vpop.xlane.xlu0 %1453
        %v1455 = vmax.f32 %v1450, %v1454
        %v1456 = vsub.f32 %v1450, %v1455
        %v1457 = vmul.f32 %v1456, 1.442695
        %v1458 = vpow.pop %v1457
        %1460 = vset.pattern.permute.xlu0 0
        %1461 = vperm.xlu0 %1460, %v1455
        %v1462 = vpop.permute.xlu0 %1461
        %v1464 = vsub.f32 %v1449, %v1462
        %v1465 = vmul.f32 %v1464, 1.442695
        %v1466 = vpow.pop %v1465
        %v1467 = vsel %vm1326, %v1466, 0.0
        %v1468 = vld [vmem:[#allocation7] sm:$0x7]
        %v1469 = vmul.f32 %v1458, %v1468
        %v1470 = vsel %vm1451, %v1467, 0.0
        %1471 = vadd.xlane.f32.xlu0 %v1470
        %v1472 = vpop.xlane.xlu0 %1471
        %v1473 = vadd.f32 %v1469, %v1472
        %vm1474 = vcmask 2048
        %1475 = vst.msk [vmem:[#allocation7] sm:$0x7] %vm1474, %v1473
        %v1476 = vld [vmem:[#allocation8] sm:$0x7]
        %1478 = vset.pattern.permute.xlu0 0
        %1479 = vperm.xlu0 %1478, %v1458
        %v1480 = vpop.permute.xlu0 %1479
        %v1482 = vmul.f32 %v1480, %v1476
        %1483 = vmatprep.subr.mxu0 0.0
        %1484 = vmatpush1.msra.mxu0 %v1303
        %1485 = vmatprep.subr.mxu0 0.0
        %1486 = vmatpush1.msra.mxu0 %v1304
        %1487 = vmatprep.subr.mxu0 0.0
        %1488 = vmatpush1.msra.mxu0 %v1305
        %1489 = vmatprep.subr.mxu0 0.0
        %1490 = vmatpush1.msra.mxu0 %v1306
        %1491 = vmatprep.subr.mxu0 0.0
        %1492 = vmatpush1.msra.mxu0 %v1307
        %1493 = vmatprep.subr.mxu0 0.0
        %1494 = vmatpush1.msra.mxu0 %v1308
        %1495 = vmatprep.subr.mxu0 0.0
        %1496 = vmatpush1.msra.mxu0 %v1309
        %1497 = vmatprep.subr.mxu0 0.0
        %1498 = vmatpush1.msra.mxu0 %v1310
        %1499 = vmatprep.subr.mxu0 0.0
        %1500 = vmatpush1.msra.mxu0 %v1311
        %1501 = vmatprep.subr.mxu0 0.0
        %1502 = vmatpush1.msra.mxu0 %v1312
        %1503 = vmatprep.subr.mxu0 0.0
        %1504 = vmatpush1.msra.mxu0 %v1313
        %1505 = vmatprep.subr.mxu0 0.0
        %1506 = vmatpush1.msra.mxu0 %v1314
        %1507 = vmatprep.subr.mxu0 0.0
        %1508 = vmatpush1.msra.mxu0 %v1315
        %1509 = vmatprep.subr.mxu0 0.0
        %1510 = vmatpush1.msra.mxu0 %v1316
        %1511 = vmatprep.subr.mxu0 0.0
        %1512 = vmatpush1.msra.mxu0 %v1317
        %1513 = vmatprep.subr.mxu0 0.0
        %1514 = vmatpush1.msra.mxu0 %v1318
        %1515 = vmatprep.subr.mxu0 0.0
        %1516 = vmatpush1.msra.mxu0 0.0
        %1517 = vmatprep.subr.mxu0 0.0
        %1518 = vmatpush1.msra.mxu0 0.0
        %1519 = vmatprep.subr.mxu0 0.0
        %1520 = vmatpush1.msra.mxu0 0.0
        %1521 = vmatprep.subr.mxu0 0.0
        %1522 = vmatpush1.msra.mxu0 0.0
        %1523 = vmatprep.subr.mxu0 0.0
        %1524 = vmatpush1.msra.mxu0 0.0
        %1525 = vmatprep.subr.mxu0 0.0
        %1526 = vmatpush1.msra.mxu0 0.0
        %1527 = vmatprep.subr.mxu0 0.0
        %1528 = vmatpush1.msra.mxu0 0.0
        %1529 = vmatprep.subr.mxu0 0.0
        %1530 = vmatpush1.msra.mxu0 0.0
        %1531 = vmatprep.subr.mxu0 0.0
        %1532 = vmatpush1.msra.mxu0 0.0
        %1533 = vmatprep.subr.mxu0 0.0
        %1534 = vmatpush1.msra.mxu0 0.0
        %1535 = vmatprep.subr.mxu0 0.0
        %1536 = vmatpush1.msra.mxu0 0.0
        %1537 = vmatprep.subr.mxu0 0.0
        %1538 = vmatpush1.msra.mxu0 0.0
        %1539 = vmatprep.subr.mxu0 0.0
        %1540 = vmatpush1.msra.mxu0 0.0
        %1541 = vmatprep.subr.mxu0 0.0
        %1542 = vmatpush1.msra.mxu0 0.0
        %1543 = vmatprep.subr.mxu0 0.0
        %1544 = vmatpush1.msra.mxu0 0.0
        %1545 = vmatprep.subr.mxu0 0.0
        %1546 = vmatpush1.msra.mxu0 0.0
        %1547 = vmatprep.mubr.f32.mxu0 0.0
        %1548 = vmatmul.mubr.f32.gmra.mrb[0].mxu0 %v1467
        %v1549 = vpop.f32.mrb[0].mxu0
        %v1550 = vadd.f32 0.0, %v1549
        %v1551 = vpop.f32.mrb[0].mxu0
        %1552 = vdwg.mxu0
        %v1553 = vadd.f32 %v1482, %v1550
        %vm1554 = vcmask 256000
        %1555 = vst.msk [vmem:[#allocation8] sm:$0x7] %vm1554, %v1553
        %1556 = vst.msk [vmem:[#allocation6] sm:$0x7] %vm1474, %v1455
        %p1557 = scmp.eq.s32.totalorder %s27, 1
        // Predicated region
        $region57: #{tpu_custom_call.1} parent=43 // pred_check
          %p1558 = pneg %p1557
        $region58: #{tpu_custom_call.1} parent=43 // pred_check_branch
          %1560 = sbr.rel (%p1558) target = $region60
        $region59: #{tpu_custom_call.1} parent=43 // pred_region
          %v1561 = vld [vmem:[#allocation8] sm:$0x7]
          %v1562 = vld [vmem:[#allocation7] sm:$0x7]
          %v1563 = vadd.f32 %v1562, 1e-16
          %v1564 = vrcp.pop %v1563
          %1566 = vset.pattern.permute.xlu0 0
          %1567 = vperm.xlu0 %1566, %v1564
          %v1568 = vpop.permute.xlu0 %1567
          %v1570 = vmul.f32 %v1561, %v1568
          %1571 = vst.msk [vmem:[#allocation5] sm:$0x7] %vm1554, %v1570
          %p1572 = scmp.eq.s32.totalorder %s26, 2
          // Predicated region
          $region61: #{tpu_custom_call.1} parent=59 // pred_check
            %p1573 = pneg %p1572
          $region62: #{tpu_custom_call.1} parent=59 // pred_check_branch
            %1575 = sbr.rel (%p1573) target = $region64
          $region63: #{tpu_custom_call.1} parent=59 // pred_region
            %v1576 = vld [vmem:[#allocation4] sm:$0x7]
            %1577 = vst.msk [vmem:[#allocation12] sm:$0x7] %vm1554, %v1576
            %1578 = vst.msk [vmem:[#allocation13] sm:$0x7] %vm1554, %v1570
          $region64: #{tpu_custom_call.1} parent=59 // pred_fallthru
            _
        $region60: #{tpu_custom_call.1} parent=43 // pred_fallthru
          _
        // Predicated region
        $region65: #{tpu_custom_call.1} parent=43 // pred_check
          %p1579 = pneg %p183
        $region66: #{tpu_custom_call.1} parent=43 // pred_check_branch
          %1581 = sbr.rel (%p1579) target = $region68
        $region67: #{tpu_custom_call.1} parent=43 // pred_region
          %s1583 = ssub.s32 64, 64
          %1584 = vsyncadd [#allocation11], %s1583
          %s1586 = sshll.u32 [#allocation12], 4
          %s1587 = int_to_ptr.vmem [resolvable:$true] %s1586
          %1589 = dma.vmem_to_hbm [thread:$0]  %s1587, 64, %s6, [#allocation11]
        $region68: #{tpu_custom_call.1} parent=43 // pred_fallthru
          _
        // Predicated region
        $region69: #{tpu_custom_call.1} parent=43 // pred_check
          %p1590 = pneg %p204
        $region70: #{tpu_custom_call.1} parent=43 // pred_check_branch
          %1592 = sbr.rel (%p1590) target = $region72
        $region71: #{tpu_custom_call.1} parent=43 // pred_region
          %s1594 = ssub.s32 64, 64
          %1595 = vsyncadd [#allocation14], %s1594
          %s1597 = sshll.u32 [#allocation13], 4
          %s1598 = int_to_ptr.vmem [resolvable:$true] %s1597
          %1600 = dma.vmem_to_hbm [thread:$0]  %s1598, 64, %s7, [#allocation14]
        $region72: #{tpu_custom_call.1} parent=43 // pred_fallthru
          _
        // Predicated region
        $region73: #{tpu_custom_call.1} parent=43 // pred_check
          %p1601 = pneg %p183
        $region74: #{tpu_custom_call.1} parent=43 // pred_check_branch
          %1603 = sbr.rel (%p1601) target = $region76
        $region75: #{tpu_custom_call.1} parent=43 // pred_region
          %1604 = dma.done [#allocation11], 64
        $region76: #{tpu_custom_call.1} parent=43 // pred_fallthru
          _
        // Predicated region
        $region77: #{tpu_custom_call.1} parent=43 // pred_check
          %p1605 = pneg %p204
        $region78: #{tpu_custom_call.1} parent=43 // pred_check_branch
          %1607 = sbr.rel (%p1605) target = $region80
        $region79: #{tpu_custom_call.1} parent=43 // pred_region
          %1608 = dma.done [#allocation14], 64
        $region80: #{tpu_custom_call.1} parent=43 // pred_fallthru
          _
      $region44: #{tpu_custom_call.1} parent=5 // pred_fallthru
        _
      %p1609 = scmp.le.s32.totalorder 2, %s17
      // Predicated region
      $region81: #{tpu_custom_call.1} parent=5 // pred_check
        %p1610 = pneg %p1609
      $region82: #{tpu_custom_call.1} parent=5 // pred_check_branch
        %1612 = sbr.rel (%p1610) target = $region84
      $region83: #{tpu_custom_call.1} parent=5 // pred_region
        %s1613 = ssub.s32 %s17, 2
      $region84: #{tpu_custom_call.1} parent=5 // pred_fallthru
        _
    $region6: #{tpu_custom_call.1} parent=1 // loop_footer
      %s21 = sadd.s32 1, %s17
    $region7: #{tpu_custom_call.1} parent=1 // loop_footer_branch
      %16 = sbr.rel target = $region3
    $region8: #{tpu_custom_call.1} parent=1 // loop_exit
      _
    %1614 = vsyncpa [#allocation10], 1
    %s1615 = scalar_lea.sflag [#allocation10], 1
    %1616 = vsyncpa %s1615, 1
    %1617 = vsyncpa [#allocation11], 1
    %s1618 = scalar_lea.sflag [#allocation11], 1
    %1619 = vsyncpa %s1618, 1
    %1620 = vsyncpa [#allocation14], 1

</llo_original>
